<compile_context>
chip_gen: v7x
topology: tpu7x:2x2x1
jax: 0.10.0
libtpu: 0.0.40
codegen_flags: <defaults>
</compile_context>

<pallas_src>
import jax
import jax.numpy as jnp
from jax.experimental import pallas as pl
from jax.experimental.pallas import tpu as pltpu


def _local_graph_kernel(A_ref, hidden_ref, hs_ref,
                        wa1_ref, wb1_ref, wa2_ref, wb2_ref,
                        out_ref):
    # Blocks: A [BB,N,N], hidden [BB,N,H], hs [BB,H], weights [1,H], out [BB,N,H]
    hidden = hidden_ref[...]                       # [BB, N, H]
    hs = hs_ref[...]                               # [BB, H]
    A = A_ref[...]                                 # [BB, N, N]

    wa1 = wa1_ref[...]                             # [1, H]
    wb1 = wb1_ref[...]                             # [1, H]
    wa2 = wa2_ref[...]                             # [1, H]
    wb2 = wb2_ref[...]                             # [1, H]

    # u_k[b,i,:] = wa_k * hidden[b,i,:] + wb_k * hs[b,:]
    u1 = hidden * wa1[None, :, :] + (hs * wb1)[:, None, :]   # [BB, N, H]
    u2 = hidden * wa2[None, :, :] + (hs * wb2)[:, None, :]   # [BB, N, H]

    # att_k[b,i,j] = u_k[b,i,:] . hidden[b,j,:]   (batched MXU matmul, f32 acc)
    att1 = jnp.einsum('bih,bjh->bij', u1, hidden,
                      preferred_element_type=jnp.float32)    # [BB, N, N]
    att2 = jnp.einsum('bih,bjh->bij', u2, hidden,
                      preferred_element_type=jnp.float32)    # [BB, N, N]

    slope = jnp.float32(0.2)
    att1 = jnp.where(att1 > 0, att1, slope * att1)           # LeakyReLU(0.2)
    att2 = jnp.where(att2 > 0, att2, slope * att2)

    neg = jnp.float32(-9e15)
    logits = jnp.where(A == jnp.float32(1.0), att1, neg)
    logits = jnp.where(A == jnp.float32(2.0), att2, logits)

    # Row softmax over neighbors j (all-masked rows -> uniform 1/N, exactly
    # like torch.softmax on a row of identical -9e15 values).
    m = jnp.max(logits, axis=-1, keepdims=True)
    e = jnp.exp(logits - m)                                   # EUP
    s = jnp.sum(e, axis=-1, keepdims=True)                    # XLU reduce
    p = e * (jnp.float32(1.0) / s)                            # recip on [BB,N,1], bcast mul

    out_ref[...] = jnp.einsum('bij,bjh->bih', p, hidden,
                              preferred_element_type=jnp.float32
                              ).astype(out_ref.dtype)


def local_graph_pallas(A, hidden, hs, wa1, wa2, wb1, wb2, *, block_b=None):
    """A: [B,N,N] (edge types 0/1/2), hidden: [B,N,H], hs: [B,H],
    w*: nn.Linear(H, 1, bias=False).weight  ->  shape [1,H] (or [H])."""
    B, N, H = hidden.shape
    if block_b is None:
        block_b = min(B, 8)
    block_b = min(block_b, B)

    A = A.astype(jnp.float32)
    hidden = hidden.astype(jnp.float32)
    hs = hs.astype(jnp.float32)

    def as2d(w):
        return jnp.asarray(w, jnp.float32).reshape(1, H)

    # TODO(synk): for very large N the [N,N] attention block should also be
    # tiled over query rows; at session-graph sizes N fits VMEM easily.
    grid = (pl.cdiv(B, block_b),)

    cost = pl.CostEstimate(
        flops=6 * B * N * N * H,                 # two att matmuls + aggregation
        transcendentals=B * N * N,               # softmax exps
        bytes_accessed=4 * (A.size + hidden.size + hs.size + 4 * H + B * N * H),
    )

    return pl.pallas_call(
        _local_graph_kernel,
        out_shape=jax.ShapeDtypeStruct((B, N, H), jnp.float32),
        grid=grid,
        in_specs=[
            pl.BlockSpec((block_b, N, N), lambda b: (b, 0, 0)),   # A
            pl.BlockSpec((block_b, N, H), lambda b: (b, 0, 0)),   # hidden
            pl.BlockSpec((block_b, H),    lambda b: (b, 0)),      # hs
            pl.BlockSpec((1, H), lambda b: (0, 0)),               # wa1
            pl.BlockSpec((1, H), lambda b: (0, 0)),               # wb1
            pl.BlockSpec((1, H), lambda b: (0, 0)),               # wa2
            pl.BlockSpec((1, H), lambda b: (0, 0)),               # wb2
        ],
        out_specs=pl.BlockSpec((block_b, N, H), lambda b: (b, 0, 0)),
        compiler_params=pltpu.CompilerParams(
            dimension_semantics=("parallel",)),   # megacore on v7x; no-op elsewhere
        cost_estimate=cost,
    )(A, hidden, hs, as2d(wa1), as2d(wb1), as2d(wa2), as2d(wb2))


def local_graph_reference(A, hidden, hs, wa1, wa2, wb1, wb2):
    """Pure-JAX mirror of the PyTorch forward (repeat_interleave / repeat path)."""
    B, N, H = hidden.shape
    A = A.astype(jnp.float32)
    h1 = jnp.repeat(hidden, N, axis=1)                    # repeat_interleave(N, dim=1)
    h2 = jnp.tile(hidden, (1, N, 1))                      # repeat(1, N, 1)

    def lin(x, w):                                        # nn.Linear(H,1,bias=False)
        return x @ jnp.asarray(w, jnp.float32).reshape(H, 1)

    def leaky(x):
        return jnp.where(x > 0, x, 0.2 * x)

    att1 = leaky(lin(h1 * h2, wa1) + lin(hs[:, None, :] * h2, wb1)).reshape(B, N, N)
    att2 = leaky(lin(h1 * h2, wa2) + lin(hs[:, None, :] * h2, wb2)).reshape(B, N, N)

    neg = -9e15 * jnp.ones_like(A)
    alpha = jnp.where(A == 1, att1, neg)
    alpha = jnp.where(A == 2, att2, alpha)
    alpha = jax.nn.softmax(alpha, axis=2)
    return alpha @ hidden


if __name__ == "__main__":
    B, N, H = 16, 16, 128          # batch, graph nodes per session, hidden size

    key = jax.random.PRNGKey(0)
    k = jax.random.split(key, 7)

    hidden = jax.random.normal(k[0], (B, N, H), dtype=jnp.float32)
    hs = jax.random.normal(k[1], (B, H), dtype=jnp.float32)
    # Adjacency with edge types {0: none, 1: in, 2: out}
    A = jax.random.randint(k[2], (B, N, N), 0, 3).astype(jnp.float32)

    scale = 1.0 / (H ** 0.5)
    wa1 = jax.random.normal(k[3], (1, H), dtype=jnp.float32) * scale
    wa2 = jax.random.normal(k[4], (1, H), dtype=jnp.float32) * scale
    wb1 = jax.random.normal(k[5], (1, H), dtype=jnp.float32) * scale
    wb2 = jax.random.normal(k[6], (1, H), dtype=jnp.float32) * scale

    out = local_graph_pallas(A, hidden, hs, wa1, wa2, wb1, wb2, block_b=8)
    out = jax.block_until_ready(out)

    ref = local_graph_reference(A, hidden, hs, wa1, wa2, wb1, wb2)
    assert out.shape == (B, N, H), out.shape
    max_err = float(jnp.max(jnp.abs(out - ref)))
    assert jnp.allclose(out, ref, atol=2e-3, rtol=2e-3), max_err

    print("KERNEL_OK")
</pallas_src>

<mosaic_0001>
module attributes {stable_mosaic.version = 11 : i64} {
  func.func @_local_graph_kernel(%arg0: i32, %arg1: memref<8x16x16xf32, #tpu.memory_space<vmem>>, %arg2: memref<8x16x128xf32, #tpu.memory_space<vmem>>, %arg3: memref<8x128xf32, #tpu.memory_space<vmem>>, %arg4: memref<1x128xf32, #tpu.memory_space<vmem>>, %arg5: memref<1x128xf32, #tpu.memory_space<vmem>>, %arg6: memref<1x128xf32, #tpu.memory_space<vmem>>, %arg7: memref<1x128xf32, #tpu.memory_space<vmem>>, %arg8: memref<8x16x128xf32, #tpu.memory_space<vmem>>) attributes {dimension_semantics = [#tpu.dimension_semantics<parallel>], iteration_bounds = array<i64: 2>, scalar_prefetch = 0 : i64, scratch_operands = 0 : i64, tpu.core_type = #tpu.core_type<tc>, window_params = [{transform_indices = @transform_0, window_bounds = array<i64: 8, 16, 16>}, {transform_indices = @transform_1, window_bounds = array<i64: 8, 16, 128>}, {transform_indices = @transform_2, window_bounds = array<i64: 8, 128>}, {pipeline_mode = #tpu.pipeline_mode<synchronous>, transform_indices = @transform_3, window_bounds = array<i64: 1, 128>}, {pipeline_mode = #tpu.pipeline_mode<synchronous>, transform_indices = @transform_4, window_bounds = array<i64: 1, 128>}, {pipeline_mode = #tpu.pipeline_mode<synchronous>, transform_indices = @transform_5, window_bounds = array<i64: 1, 128>}, {pipeline_mode = #tpu.pipeline_mode<synchronous>, transform_indices = @transform_6, window_bounds = array<i64: 1, 128>}, {transform_indices = @transform_7, window_bounds = array<i64: 8, 16, 128>}]} {
    %c0 = arith.constant 0 : index
    %c0_0 = arith.constant 0 : index
    %c0_1 = arith.constant 0 : index
    %0 = vector.load %arg2[%c0, %c0_0, %c0_1] : memref<8x16x128xf32, #tpu.memory_space<vmem>>, vector<8x16x128xf32>
    %c0_2 = arith.constant 0 : index
    %c0_3 = arith.constant 0 : index
    %1 = vector.load %arg3[%c0_2, %c0_3] : memref<8x128xf32, #tpu.memory_space<vmem>>, vector<8x128xf32>
    %c0_4 = arith.constant 0 : index
    %c0_5 = arith.constant 0 : index
    %c0_6 = arith.constant 0 : index
    %2 = vector.load %arg1[%c0_4, %c0_5, %c0_6] : memref<8x16x16xf32, #tpu.memory_space<vmem>>, vector<8x16x16xf32>
    %c0_7 = arith.constant 0 : index
    %c0_8 = arith.constant 0 : index
    %3 = vector.load %arg4[%c0_7, %c0_8] : memref<1x128xf32, #tpu.memory_space<vmem>>, vector<1x128xf32>
    %c0_9 = arith.constant 0 : index
    %c0_10 = arith.constant 0 : index
    %4 = vector.load %arg5[%c0_9, %c0_10] : memref<1x128xf32, #tpu.memory_space<vmem>>, vector<1x128xf32>
    %c0_11 = arith.constant 0 : index
    %c0_12 = arith.constant 0 : index
    %5 = vector.load %arg6[%c0_11, %c0_12] : memref<1x128xf32, #tpu.memory_space<vmem>>, vector<1x128xf32>
    %c0_13 = arith.constant 0 : index
    %c0_14 = arith.constant 0 : index
    %6 = vector.load %arg7[%c0_13, %c0_14] : memref<1x128xf32, #tpu.memory_space<vmem>>, vector<1x128xf32>
    %7 = vector.shape_cast %3 : vector<1x128xf32> to vector<1x1x128xf32>
    %8 = vector.broadcast %7 : vector<1x1x128xf32> to vector<8x16x128xf32>
    %9 = arith.mulf %0, %8 : vector<8x16x128xf32>
    %10 = vector.broadcast %4 : vector<1x128xf32> to vector<8x128xf32>
    %11 = arith.mulf %1, %10 : vector<8x128xf32>
    %12 = vector.shape_cast %11 : vector<8x128xf32> to vector<8x1x128xf32>
    %13 = vector.broadcast %12 : vector<8x1x128xf32> to vector<8x16x128xf32>
    %14 = arith.addf %9, %13 : vector<8x16x128xf32>
    %15 = vector.shape_cast %5 : vector<1x128xf32> to vector<1x1x128xf32>
    %16 = vector.broadcast %15 : vector<1x1x128xf32> to vector<8x16x128xf32>
    %17 = arith.mulf %0, %16 : vector<8x16x128xf32>
    %18 = vector.broadcast %6 : vector<1x128xf32> to vector<8x128xf32>
    %19 = arith.mulf %1, %18 : vector<8x128xf32>
    %20 = vector.shape_cast %19 : vector<8x128xf32> to vector<8x1x128xf32>
    %21 = vector.broadcast %20 : vector<8x1x128xf32> to vector<8x16x128xf32>
    %22 = arith.addf %17, %21 : vector<8x16x128xf32>
    "tpu.trace_start"() <{level = 10 : i32, message = "bih,bjh->bij"}> : () -> ()
    %cst = arith.constant dense<0.000000e+00> : vector<8x16x16xf32>
    %23 = tpu.matmul %14, %0, %cst {dimension_numbers = #tpu.dot_dimension_numbers<[2], [2], [1], [1], [0, 0, 0, 1, 1, 1], [0], [0]>} : vector<8x16x128xf32>, vector<8x16x128xf32>, vector<8x16x16xf32> -> vector<8x16x16xf32>
    %cst_15 = arith.constant dense<0.000000e+00> : vector<8x16x16xf32>
    %24 = tpu.matmul %22, %0, %cst_15 {dimension_numbers = #tpu.dot_dimension_numbers<[2], [2], [1], [1], [0, 0, 0, 1, 1, 1], [0], [0]>} : vector<8x16x128xf32>, vector<8x16x128xf32>, vector<8x16x16xf32> -> vector<8x16x16xf32>
    %cst_16 = arith.constant 0.000000e+00 : f32
    "tpu.trace_stop"() : () -> ()
    %25 = vector.broadcast %cst_16 : f32 to vector<8x16x16xf32>
    %26 = arith.cmpf ogt, %23, %25 : vector<8x16x16xf32>
    %cst_17 = arith.constant 2.000000e-01 : f32
    %27 = vector.broadcast %cst_17 : f32 to vector<8x16x16xf32>
    %28 = arith.mulf %27, %23 : vector<8x16x16xf32>
    %29 = arith.select %26, %23, %28 : vector<8x16x16xi1>, vector<8x16x16xf32>
    %cst_18 = arith.constant 0.000000e+00 : f32
    %30 = vector.broadcast %cst_18 : f32 to vector<8x16x16xf32>
    %31 = arith.cmpf ogt, %24, %30 : vector<8x16x16xf32>
    %cst_19 = arith.constant 2.000000e-01 : f32
    %32 = vector.broadcast %cst_19 : f32 to vector<8x16x16xf32>
    %33 = arith.mulf %32, %24 : vector<8x16x16xf32>
    %34 = arith.select %31, %24, %33 : vector<8x16x16xi1>, vector<8x16x16xf32>
    %cst_20 = arith.constant 1.000000e+00 : f32
    %35 = vector.broadcast %cst_20 : f32 to vector<8x16x16xf32>
    %36 = arith.cmpf oeq, %2, %35 : vector<8x16x16xf32>
    %cst_21 = arith.constant -9.000000e+15 : f32
    %37 = vector.broadcast %cst_21 : f32 to vector<8x16x16xf32>
    %38 = arith.select %36, %29, %37 : vector<8x16x16xi1>, vector<8x16x16xf32>
    %cst_22 = arith.constant 2.000000e+00 : f32
    %39 = vector.broadcast %cst_22 : f32 to vector<8x16x16xf32>
    %40 = arith.cmpf oeq, %2, %39 : vector<8x16x16xf32>
    %41 = arith.select %40, %34, %38 : vector<8x16x16xi1>, vector<8x16x16xf32>
    %cst_23 = arith.constant dense<0xFF800000> : vector<8x16xf32>
    %42 = vector.multi_reduction <maximumf>, %41, %cst_23 [2] : vector<8x16x16xf32> to vector<8x16xf32>
    %43 = vector.shape_cast %42 : vector<8x16xf32> to vector<8x16x1xf32>
    %44 = vector.broadcast %43 : vector<8x16x1xf32> to vector<8x16x16xf32>
    %45 = arith.subf %41, %44 : vector<8x16x16xf32>
    %46 = math.exp %45 : vector<8x16x16xf32>
    %cst_24 = arith.constant dense<0.000000e+00> : vector<8x16xf32>
    %47 = vector.multi_reduction <add>, %46, %cst_24 [2] : vector<8x16x16xf32> to vector<8x16xf32>
    %48 = vector.shape_cast %47 : vector<8x16xf32> to vector<8x16x1xf32>
    %cst_25 = arith.constant 1.000000e+00 : f32
    %49 = vector.broadcast %cst_25 : f32 to vector<8x16x1xf32>
    %50 = arith.divf %49, %48 : vector<8x16x1xf32>
    %51 = vector.broadcast %50 : vector<8x16x1xf32> to vector<8x16x16xf32>
    %52 = arith.mulf %46, %51 : vector<8x16x16xf32>
    "tpu.trace_start"() <{level = 10 : i32, message = "bij,bjh->bih"}> : () -> ()
    %cst_26 = arith.constant dense<0.000000e+00> : vector<8x16x128xf32>
    %53 = tpu.matmul %52, %0, %cst_26 {dimension_numbers = #tpu.dot_dimension_numbers<[2], [1], [1], [2], [0, 0, 0, 1, 1, 2], [0], [0]>} : vector<8x16x16xf32>, vector<8x16x128xf32>, vector<8x16x128xf32> -> vector<8x16x128xf32>
    "tpu.trace_stop"() : () -> ()
    %c0_27 = arith.constant 0 : index
    %c0_28 = arith.constant 0 : index
    %c0_29 = arith.constant 0 : index
    %54 = vector.load %arg8[%c0_27, %c0_28, %c0_29] : memref<8x16x128xf32, #tpu.memory_space<vmem>>, vector<8x16x128xf32>
    tpu.vector_store %arg8[%c0_27, %c0_28, %c0_29], %53 {strides = array<i32>} : memref<8x16x128xf32, #tpu.memory_space<vmem>>, vector<8x16x128xf32>,
    return
  }
  func.func @transform_0(%arg0: i32) -> (i32, i32, i32) {
    %c0_i32 = arith.constant 0 : i32
    %c0_i32_0 = arith.constant 0 : i32
    %c0_i32_1 = arith.constant 0 : i32
    return %arg0, %c0_i32, %c0_i32_0 : i32, i32, i32
  }
  func.func @transform_1(%arg0: i32) -> (i32, i32, i32) {
    %c0_i32 = arith.constant 0 : i32
    %c0_i32_0 = arith.constant 0 : i32
    %c0_i32_1 = arith.constant 0 : i32
    return %arg0, %c0_i32, %c0_i32_0 : i32, i32, i32
  }
  func.func @transform_2(%arg0: i32) -> (i32, i32) {
    %c0_i32 = arith.constant 0 : i32
    %c0_i32_0 = arith.constant 0 : i32
    return %arg0, %c0_i32 : i32, i32
  }
  func.func @transform_3(%arg0: i32) -> (i32, i32) {
    %c0_i32 = arith.constant 0 : i32
    %c0_i32_0 = arith.constant 0 : i32
    %c0_i32_1 = arith.constant 0 : i32
    return %c0_i32, %c0_i32_0 : i32, i32
  }
  func.func @transform_4(%arg0: i32) -> (i32, i32) {
    %c0_i32 = arith.constant 0 : i32
    %c0_i32_0 = arith.constant 0 : i32
    %c0_i32_1 = arith.constant 0 : i32
    return %c0_i32, %c0_i32_0 : i32, i32
  }
  func.func @transform_5(%arg0: i32) -> (i32, i32) {
    %c0_i32 = arith.constant 0 : i32
    %c0_i32_0 = arith.constant 0 : i32
    %c0_i32_1 = arith.constant 0 : i32
    return %c0_i32, %c0_i32_0 : i32, i32
  }
  func.func @transform_6(%arg0: i32) -> (i32, i32) {
    %c0_i32 = arith.constant 0 : i32
    %c0_i32_0 = arith.constant 0 : i32
    %c0_i32_1 = arith.constant 0 : i32
    return %c0_i32, %c0_i32_0 : i32, i32
  }
  func.func @transform_7(%arg0: i32) -> (i32, i32, i32) {
    %c0_i32 = arith.constant 0 : i32
    %c0_i32_0 = arith.constant 0 : i32
    %c0_i32_1 = arith.constant 0 : i32
    return %arg0, %c0_i32, %c0_i32_0 : i32, i32, i32
  }
}

</mosaic_0001>

<llo_original>
// kernel: tpu_custom_call.1
$region0: #{tpu_custom_call.1}
  #allocation0 [shape = 'u32[]', space=smem, size = 0x4, offset = 0x4, fixed_abs, tag = 'smem constant byte address 0x4 - core index']
  #allocation1 [shape = 'u32[144,128]{1,0:T(1,128)}', space=vmem, size = 0x12000, scoped, tag = 'internal scratch']
  %s0 = inlined_call_operand.hbm [shape: f32[16,16,16], index: 0, kind: input, shape index: {}]
  %s1 = inlined_call_operand.hbm [shape: f32[16,16,128], index: 1, kind: input, shape index: {}]
  %s2 = inlined_call_operand.hbm [shape: f32[16,128], index: 2, kind: input, shape index: {}]
  %s3 = inlined_call_operand.vmem [shape: f32[1,128], index: 3, kind: input, shape index: {}]
  %s4 = inlined_call_operand.vmem [shape: f32[1,128], index: 4, kind: input, shape index: {}]
  %s5 = inlined_call_operand.vmem [shape: f32[1,128], index: 5, kind: input, shape index: {}]
  %s6 = inlined_call_operand.vmem [shape: f32[1,128], index: 6, kind: input, shape index: {}]
  %s7 = inlined_call_operand.hbm [shape: f32[16,16,128], index: 7, kind: output, shape index: {}]
  %s8 = sld [smem:[#allocation0]]
  $region73: #{tpu_custom_call.1} parent=0
    _
  %s10 = ssub.s32 1, %s8
  %s11 = scalar_select 0, %s10, %s8
  $region1: #{tpu_custom_call.1} parent=0
    #allocation2 [shape = 'u8[131072]{0}', space=vmem, size = 0x20000, scoped, tag = 'input window, operand 0']
    #allocation3 [shape = 's32[2]{0}', space=sflag, size = 0x8, scoped, tag = 'scoped memory for tpu_custom_call.1']
    #allocation4 [shape = 's32[2]{0}', space=sflag, size = 0x8, scoped, tag = 'scoped memory for tpu_custom_call.1']
    #allocation5 [shape = 'u8[131072]{0}', space=vmem, size = 0x20000, scoped, tag = 'input window, operand 1']
    #allocation6 [shape = 's32[2]{0}', space=sflag, size = 0x8, scoped, tag = 'scoped memory for tpu_custom_call.1']
    #allocation7 [shape = 'u8[8192]{0}', space=vmem, size = 0x2000, scoped, tag = 'input window, operand 2']
    #allocation8 [shape = 'u8[131072]{0}', space=vmem, size = 0x20000, scoped, tag = 'output window, operand 0']
    %12 = vsyncpa [#allocation3], 0
    %s13 = scalar_lea.sflag [#allocation3], 1
    %14 = vsyncpa %s13, 0
    %15 = vsyncpa [#allocation6], 0
    %s16 = scalar_lea.sflag [#allocation6], 1
    %17 = vsyncpa %s16, 0
    %18 = vsyncpa [#allocation4], 0
    %s19 = scalar_lea.sflag [#allocation4], 1
    %20 = vsyncpa %s19, 0
    loop: start=0, step=1, limit=4
    $region2: #{tpu_custom_call.1} parent=1 // loop_pre_header
      _
    $region3: #{tpu_custom_call.1} parent=1 // loop_header
      %s22 = sphi 0, %s26
      %p23 = scmp.ge.s32.totalorder %s22, 4
      %s32 = sphi 0, %s34
      %s35 = sphi 0, %s32
      %s36 = sphi 0, %s35
      %s52 = sphi 0, %s36
      %s58 = sphi 0, %s60
      %s61 = sphi 0, %s58
      %s62 = sphi 0, %s61
      %s78 = sphi 0, %s62
      %s84 = sphi 0, %s86
      %s87 = sphi 0, %s84
      %s88 = sphi 0, %s87
      %s104 = sphi 0, %s88
      %s108 = sphi 0, %s108
      %s110 = sphi 0, %s108
      %s111 = sphi 0, %s110
      %s125 = sphi 0, %s111
      %s129 = sphi 0, %s129
      %s131 = sphi 0, %s129
      %s132 = sphi 0, %s131
      %s146 = sphi 0, %s132
      %s150 = sphi 0, %s150
      %s152 = sphi 0, %s150
      %s153 = sphi 0, %s152
      %s167 = sphi 0, %s153
      %s171 = sphi 0, %s171
      %s173 = sphi 0, %s171
      %s174 = sphi 0, %s173
      %s188 = sphi 0, %s174
      %s194 = sphi 0, %s196
      %s197 = sphi 0, %s194
      %s198 = sphi 0, %s197
      %s214 = sphi 0, %s198
    $region4: #{tpu_custom_call.1} parent=1 // loop_header_branch
      %25 = sbr.rel (%p23) target = $region8
    $region5: #{tpu_custom_call.1} parent=1 // loop_body
      %s27 = ssub.s32 %s22, 1
      %s28 = ssub.s32 %s22, 2
      %s29 = sadd.s32 %s22, 1
      %s30 = ssub.s32 %s22, %s29
      %p31 = scmp.eq.s32.totalorder %s30, 0
      %s33 = sadd.s32 %s32, 1
      %s34 = scalar_select %p31, %s32, %s33
      %p37 = pneg %p31
      %p38 = scmp.eq.s32.totalorder %s22, 1
      %p39 = por %p37, %p38
      %p40 = scmp.ne.s32.totalorder %s32, %s35
      %p41 = scmp.eq.s32.totalorder %s22, 0
      %p42 = por %p40, %p41
      %p43 = scmp.ne.s32.totalorder %s32, %s35
      %p44 = scmp.eq.s32.totalorder %s27, 1
      %p45 = por %p43, %p44
      %p46 = scmp.ne.s32.totalorder %s35, %s36
      %p47 = scmp.eq.s32.totalorder %s27, 0
      %p48 = por %p46, %p47
      %p49 = scmp.ne.s32.totalorder %s35, %s36
      %p50 = scmp.eq.s32.totalorder %s28, 1
      %p51 = por %p49, %p50
      %p53 = scmp.ne.s32.totalorder %s36, %s52
      %p54 = scmp.eq.s32.totalorder %s28, 0
      %p55 = por %p53, %p54
      %s56 = ssub.s32 %s22, %s29
      %p57 = scmp.eq.s32.totalorder %s56, 0
      %s59 = sadd.s32 %s58, 1
      %s60 = scalar_select %p57, %s58, %s59
      %p63 = pneg %p57
      %p64 = scmp.eq.s32.totalorder %s22, 1
      %p65 = por %p63, %p64
      %p66 = scmp.ne.s32.totalorder %s58, %s61
      %p67 = scmp.eq.s32.totalorder %s22, 0
      %p68 = por %p66, %p67
      %p69 = scmp.ne.s32.totalorder %s58, %s61
      %p70 = scmp.eq.s32.totalorder %s27, 1
      %p71 = por %p69, %p70
      %p72 = scmp.ne.s32.totalorder %s61, %s62
      %p73 = scmp.eq.s32.totalorder %s27, 0
      %p74 = por %p72, %p73
      %p75 = scmp.ne.s32.totalorder %s61, %s62
      %p76 = scmp.eq.s32.totalorder %s28, 1
      %p77 = por %p75, %p76
      %p79 = scmp.ne.s32.totalorder %s62, %s78
      %p80 = scmp.eq.s32.totalorder %s28, 0
      %p81 = por %p79, %p80
      %s82 = ssub.s32 %s22, %s29
      %p83 = scmp.eq.s32.totalorder %s82, 0
      %s85 = sadd.s32 %s84, 1
      %s86 = scalar_select %p83, %s84, %s85
      %p89 = pneg %p83
      %p90 = scmp.eq.s32.totalorder %s22, 1
      %p91 = por %p89, %p90
      %p92 = scmp.ne.s32.totalorder %s84, %s87
      %p93 = scmp.eq.s32.totalorder %s22, 0
      %p94 = por %p92, %p93
      %p95 = scmp.ne.s32.totalorder %s84, %s87
      %p96 = scmp.eq.s32.totalorder %s27, 1
      %p97 = por %p95, %p96
      %p98 = scmp.ne.s32.totalorder %s87, %s88
      %p99 = scmp.eq.s32.totalorder %s27, 0
      %p100 = por %p98, %p99
      %p101 = scmp.ne.s32.totalorder %s87, %s88
      %p102 = scmp.eq.s32.totalorder %s28, 1
      %p103 = por %p101, %p102
      %p105 = scmp.ne.s32.totalorder %s88, %s104
      %p106 = scmp.eq.s32.totalorder %s28, 0
      %p107 = por %p105, %p106
      %s109 = sadd.s32 %s108, 1
      %p112 = scmp.eq.s32.totalorder %s22, 1
      %p113 = scmp.ne.s32.totalorder %s108, %s110
      %p114 = scmp.eq.s32.totalorder %s22, 0
      %p115 = por %p113, %p114
      %p116 = scmp.ne.s32.totalorder %s108, %s110
      %p117 = scmp.eq.s32.totalorder %s27, 1
      %p118 = por %p116, %p117
      %p119 = scmp.ne.s32.totalorder %s110, %s111
      %p120 = scmp.eq.s32.totalorder %s27, 0
      %p121 = por %p119, %p120
      %p122 = scmp.ne.s32.totalorder %s110, %s111
      %p123 = scmp.eq.s32.totalorder %s28, 1
      %p124 = por %p122, %p123
      %p126 = scmp.ne.s32.totalorder %s111, %s125
      %p127 = scmp.eq.s32.totalorder %s28, 0
      %p128 = por %p126, %p127
      %s130 = sadd.s32 %s129, 1
      %p133 = scmp.eq.s32.totalorder %s22, 1
      %p134 = scmp.ne.s32.totalorder %s129, %s131
      %p135 = scmp.eq.s32.totalorder %s22, 0
      %p136 = por %p134, %p135
      %p137 = scmp.ne.s32.totalorder %s129, %s131
      %p138 = scmp.eq.s32.totalorder %s27, 1
      %p139 = por %p137, %p138
      %p140 = scmp.ne.s32.totalorder %s131, %s132
      %p141 = scmp.eq.s32.totalorder %s27, 0
      %p142 = por %p140, %p141
      %p143 = scmp.ne.s32.totalorder %s131, %s132
      %p144 = scmp.eq.s32.totalorder %s28, 1
      %p145 = por %p143, %p144
      %p147 = scmp.ne.s32.totalorder %s132, %s146
      %p148 = scmp.eq.s32.totalorder %s28, 0
      %p149 = por %p147, %p148
      %s151 = sadd.s32 %s150, 1
      %p154 = scmp.eq.s32.totalorder %s22, 1
      %p155 = scmp.ne.s32.totalorder %s150, %s152
      %p156 = scmp.eq.s32.totalorder %s22, 0
      %p157 = por %p155, %p156
      %p158 = scmp.ne.s32.totalorder %s150, %s152
      %p159 = scmp.eq.s32.totalorder %s27, 1
      %p160 = por %p158, %p159
      %p161 = scmp.ne.s32.totalorder %s152, %s153
      %p162 = scmp.eq.s32.totalorder %s27, 0
      %p163 = por %p161, %p162
      %p164 = scmp.ne.s32.totalorder %s152, %s153
      %p165 = scmp.eq.s32.totalorder %s28, 1
      %p166 = por %p164, %p165
      %p168 = scmp.ne.s32.totalorder %s153, %s167
      %p169 = scmp.eq.s32.totalorder %s28, 0
      %p170 = por %p168, %p169
      %s172 = sadd.s32 %s171, 1
      %p175 = scmp.eq.s32.totalorder %s22, 1
      %p176 = scmp.ne.s32.totalorder %s171, %s173
      %p177 = scmp.eq.s32.totalorder %s22, 0
      %p178 = por %p176, %p177
      %p179 = scmp.ne.s32.totalorder %s171, %s173
      %p180 = scmp.eq.s32.totalorder %s27, 1
      %p181 = por %p179, %p180
      %p182 = scmp.ne.s32.totalorder %s173, %s174
      %p183 = scmp.eq.s32.totalorder %s27, 0
      %p184 = por %p182, %p183
      %p185 = scmp.ne.s32.totalorder %s173, %s174
      %p186 = scmp.eq.s32.totalorder %s28, 1
      %p187 = por %p185, %p186
      %p189 = scmp.ne.s32.totalorder %s174, %s188
      %p190 = scmp.eq.s32.totalorder %s28, 0
      %p191 = por %p189, %p190
      %s192 = ssub.s32 %s22, %s29
      %p193 = scmp.eq.s32.totalorder %s192, 0
      %s195 = sadd.s32 %s194, 1
      %s196 = scalar_select %p193, %s194, %s195
      %p199 = pneg %p193
      %p200 = scmp.eq.s32.totalorder %s22, 1
      %p201 = por %p199, %p200
      %p202 = scmp.ne.s32.totalorder %s194, %s197
      %p203 = scmp.eq.s32.totalorder %s22, 0
      %p204 = por %p202, %p203
      %p205 = scmp.ne.s32.totalorder %s194, %s197
      %p206 = scmp.eq.s32.totalorder %s27, 1
      %p207 = por %p205, %p206
      %p208 = scmp.ne.s32.totalorder %s197, %s198
      %p209 = scmp.eq.s32.totalorder %s27, 0
      %p210 = por %p208, %p209
      %p211 = scmp.ne.s32.totalorder %s197, %s198
      %p212 = scmp.eq.s32.totalorder %s28, 1
      %p213 = por %p211, %p212
      %p215 = scmp.ne.s32.totalorder %s198, %s214
      %p216 = scmp.eq.s32.totalorder %s28, 0
      %p217 = por %p215, %p216
      %p218 = scmp.le.s32.totalorder 1, %s22
      %p219 = scmp.lt.s32.totalorder %s22, 3
      %p220 = pnand %p218, %p219
      %p221 = pneg %p220
      // Predicated region
      $region9: #{tpu_custom_call.1} parent=5 // pred_check
        _
      $region10: #{tpu_custom_call.1} parent=5 // pred_check_branch
        %223 = sbr.rel (%p220) target = $region12
      $region11: #{tpu_custom_call.1} parent=5 // pred_region
        %s224 = ssub.s32 %s22, 1
        // Predicated region
        $region13: #{tpu_custom_call.1} parent=11 // pred_check
          %p225 = pneg %p121
        $region14: #{tpu_custom_call.1} parent=11 // pred_check_branch
          %227 = sbr.rel (%p225) target = $region16
        $region15: #{tpu_custom_call.1} parent=11 // pred_region
          _
        $region16: #{tpu_custom_call.1} parent=11 // pred_fallthru
          _
        // Predicated region
        $region17: #{tpu_custom_call.1} parent=11 // pred_check
          %p228 = pneg %p142
        $region18: #{tpu_custom_call.1} parent=11 // pred_check_branch
          %230 = sbr.rel (%p228) target = $region20
        $region19: #{tpu_custom_call.1} parent=11 // pred_region
          _
        $region20: #{tpu_custom_call.1} parent=11 // pred_fallthru
          _
        // Predicated region
        $region21: #{tpu_custom_call.1} parent=11 // pred_check
          %p231 = pneg %p163
        $region22: #{tpu_custom_call.1} parent=11 // pred_check_branch
          %233 = sbr.rel (%p231) target = $region24
        $region23: #{tpu_custom_call.1} parent=11 // pred_region
          _
        $region24: #{tpu_custom_call.1} parent=11 // pred_fallthru
          _
        // Predicated region
        $region25: #{tpu_custom_call.1} parent=11 // pred_check
          %p234 = pneg %p184
        $region26: #{tpu_custom_call.1} parent=11 // pred_check_branch
          %236 = sbr.rel (%p234) target = $region28
        $region27: #{tpu_custom_call.1} parent=11 // pred_region
          _
        $region28: #{tpu_custom_call.1} parent=11 // pred_fallthru
          _
      $region12: #{tpu_custom_call.1} parent=5 // pred_fallthru
        _
      %p237 = scmp.lt.s32.totalorder %s22, 2
      // Predicated region
      $region29: #{tpu_custom_call.1} parent=5 // pred_check
        %p238 = pneg %p237
      $region30: #{tpu_custom_call.1} parent=5 // pred_check_branch
        %240 = sbr.rel (%p238) target = $region32
      $region31: #{tpu_custom_call.1} parent=5 // pred_region
        // Predicated region
        $region33: #{tpu_custom_call.1} parent=31 // pred_check
          %p241 = pneg %p42
        $region34: #{tpu_custom_call.1} parent=31 // pred_check_branch
          %243 = sbr.rel (%p241) target = $region36
        $region35: #{tpu_custom_call.1} parent=31 // pred_region
          %s244 = sand.u32 %s32, 1
          %s245 = scalar_lea.sflag [#allocation3], %s244
          %s246 = sand.u32 %s32, 1
          %s247 = smul.addr %s246, 128
          %s248 = scalar_lea.vmem [#allocation2], %s247
          %s249 = smul.u32 8, %s22
          %s251 = ssub.s32 2048, 2048
          %252 = vsyncadd %s245, %s251
          %s253 = smul.addr %s249, 2
          %s254 = smul.addr %s253, 128
          %s255 = scalar_lea.hbm %s0, %s254
          %s256 = sshll.u32 %s248, 4
          %s257 = int_to_ptr.vmem [resolvable:$true] %s256
          %262 = dma.hbm_to_vmem [thread:$0]  %s255, 2048, %s257, %s245, 128, 128, 8
        $region36: #{tpu_custom_call.1} parent=31 // pred_fallthru
          _
        // Predicated region
        $region37: #{tpu_custom_call.1} parent=31 // pred_check
          %p263 = pneg %p68
        $region38: #{tpu_custom_call.1} parent=31 // pred_check_branch
          %265 = sbr.rel (%p263) target = $region40
        $region39: #{tpu_custom_call.1} parent=31 // pred_region
          %s266 = sand.u32 %s22, 1
          %s267 = scalar_lea.sflag [#allocation6], %s266
          %s268 = sand.u32 %s58, 1
          %s269 = smul.addr %s268, 128
          %s270 = scalar_lea.vmem [#allocation5], %s269
          %s271 = smul.u32 8, %s22
          %s273 = ssub.s32 2048, 2048
          %274 = vsyncadd %s267, %s273
          %s275 = smul.addr %s271, 2
          %s276 = smul.addr %s275, 128
          %s277 = scalar_lea.hbm %s1, %s276
          %s278 = sshll.u32 %s270, 4
          %s279 = int_to_ptr.vmem [resolvable:$true] %s278
          %284 = dma.hbm_to_vmem [thread:$0]  %s277, 2048, %s279, %s267, 128, 128, 8
        $region40: #{tpu_custom_call.1} parent=31 // pred_fallthru
          _
        // Predicated region
        $region41: #{tpu_custom_call.1} parent=31 // pred_check
          %p285 = pneg %p94
        $region42: #{tpu_custom_call.1} parent=31 // pred_check_branch
          %287 = sbr.rel (%p285) target = $region44
        $region43: #{tpu_custom_call.1} parent=31 // pred_region
          %s288 = sand.u32 %s22, 1
          %s289 = scalar_lea.sflag [#allocation6], %s288
          %s290 = sand.u32 %s84, 1
          %s291 = smul.addr %s290, 8
          %s292 = scalar_lea.vmem [#allocation7], %s291
          %s294 = ssub.s32 128, 128
          %295 = vsyncadd %s289, %s294
          %s296 = smul.addr %s22, 128
          %s297 = scalar_lea.hbm %s2, %s296
          %s299 = sshll.u32 %s292, 4
          %s300 = int_to_ptr.vmem [resolvable:$true] %s299
          %302 = dma.hbm_to_vmem [thread:$0]  %s297, 128, %s300, %s289
        $region44: #{tpu_custom_call.1} parent=31 // pred_fallthru
          _
      $region32: #{tpu_custom_call.1} parent=5 // pred_fallthru
        _
      %p303 = scmp.le.s32.totalorder 1, %s22
      %p304 = scmp.lt.s32.totalorder %s22, 3
      %p305 = pnand %p303, %p304
      %p306 = pneg %p305
      // Predicated region
      $region45: #{tpu_custom_call.1} parent=5 // pred_check
        _
      $region46: #{tpu_custom_call.1} parent=5 // pred_check_branch
        %308 = sbr.rel (%p305) target = $region48
      $region47: #{tpu_custom_call.1} parent=5 // pred_region
        %s309 = ssub.s32 %s22, 1
        %s310 = sand.u32 %s35, 1
        %s311 = scalar_lea.sflag [#allocation3], %s310
        %s312 = sand.u32 %s35, 1
        %s313 = smul.addr %s312, 128
        %s314 = scalar_lea.vmem [#allocation2], %s313
        // Predicated region
        $region49: #{tpu_custom_call.1} parent=47 // pred_check
          %p315 = pneg %p48
        $region50: #{tpu_custom_call.1} parent=47 // pred_check_branch
          %317 = sbr.rel (%p315) target = $region52
        $region51: #{tpu_custom_call.1} parent=47 // pred_region
          %318 = dma.done %s311, 2048
        $region52: #{tpu_custom_call.1} parent=47 // pred_fallthru
          _
        %s319 = sand.u32 %s27, 1
        %s320 = scalar_lea.sflag [#allocation6], %s319
        %s321 = sand.u32 %s61, 1
        %s322 = smul.addr %s321, 128
        %s323 = scalar_lea.vmem [#allocation5], %s322
        // Predicated region
        $region53: #{tpu_custom_call.1} parent=47 // pred_check
          %p324 = pneg %p74
        $region54: #{tpu_custom_call.1} parent=47 // pred_check_branch
          %326 = sbr.rel (%p324) target = $region56
        $region55: #{tpu_custom_call.1} parent=47 // pred_region
          %327 = dma.done %s320, 2048
        $region56: #{tpu_custom_call.1} parent=47 // pred_fallthru
          _
        %s328 = sand.u32 %s27, 1
        %s329 = scalar_lea.sflag [#allocation6], %s328
        %s330 = sand.u32 %s87, 1
        %s331 = smul.addr %s330, 8
        %s332 = scalar_lea.vmem [#allocation7], %s331
        // Predicated region
        $region57: #{tpu_custom_call.1} parent=47 // pred_check
          %p333 = pneg %p100
        $region58: #{tpu_custom_call.1} parent=47 // pred_check_branch
          %335 = sbr.rel (%p333) target = $region60
        $region59: #{tpu_custom_call.1} parent=47 // pred_region
          %336 = dma.done %s329, 128
        $region60: #{tpu_custom_call.1} parent=47 // pred_fallthru
          _
        %s337 = sand.u32 %s35, 1
        %s338 = scalar_lea.sflag [#allocation3], %s337
        %s339 = sand.u32 %s35, 1
        %s340 = smul.addr %s339, 128
        %s341 = scalar_lea.vmem [#allocation2], %s340
        %p342 = pneg %p48
        %p343 = pneg %p45
        %s344 = sand.u32 %s27, 1
        %s345 = scalar_lea.sflag [#allocation6], %s344
        %s346 = sand.u32 %s61, 1
        %s347 = smul.addr %s346, 128
        %s348 = scalar_lea.vmem [#allocation5], %s347
        %p349 = pneg %p74
        %p350 = pneg %p71
        %s351 = sand.u32 %s27, 1
        %s352 = scalar_lea.sflag [#allocation6], %s351
        %s353 = sand.u32 %s87, 1
        %s354 = smul.addr %s353, 8
        %s355 = scalar_lea.vmem [#allocation7], %s354
        %p356 = pneg %p100
        %p357 = pneg %p97
        %p358 = pneg %p121
        %p359 = pneg %p118
        %p360 = pneg %p142
        %p361 = pneg %p139
        %p362 = pneg %p163
        %p363 = pneg %p160
        %p364 = pneg %p184
        %p365 = pneg %p181
        %p366 = pneg %p210
        %p367 = pneg %p207
        %s368 = sand.u32 %s197, 1
        %s369 = scalar_lea.sflag [#allocation4], %s368
        %s370 = sand.u32 %s197, 1
        %s371 = smul.addr %s370, 128
        %s372 = scalar_lea.vmem [#allocation8], %s371
        %s373 = smul.u32 8, %s27
        %s374 = smul.u32 8, %s27
        %s375 = smul.u32 8, %s27
        %v376 = vld [vmem:[%s323] sm:$0xff]
        %v377 = vld [vmem:[%s323 + $0x8] sm:$0xff]
        %v378 = vld [vmem:[%s323 + $0x10] sm:$0xff]
        %v379 = vld [vmem:[%s323 + $0x18] sm:$0xff]
        %v380 = vld [vmem:[%s323 + $0x20] sm:$0xff]
        %v381 = vld [vmem:[%s323 + $0x28] sm:$0xff]
        %v382 = vld [vmem:[%s323 + $0x30] sm:$0xff]
        %v383 = vld [vmem:[%s323 + $0x38] sm:$0xff]
        %v384 = vld [vmem:[%s323 + $0x40] sm:$0xff]
        %v385 = vld [vmem:[%s323 + $0x48] sm:$0xff]
        %v386 = vld [vmem:[%s323 + $0x50] sm:$0xff]
        %v387 = vld [vmem:[%s323 + $0x58] sm:$0xff]
        %v388 = vld [vmem:[%s323 + $0x60] sm:$0xff]
        %v389 = vld [vmem:[%s323 + $0x68] sm:$0xff]
        %v390 = vld [vmem:[%s323 + $0x70] sm:$0xff]
        %v391 = vld [vmem:[%s323 + $0x78] sm:$0xff]
        %v392 = vld [vmem:[%s332] sm:$0xff]
        %v393 = vld [vmem:[%s314] sm:$0xff]
        %v394 = vld [vmem:[%s314 + $0x8] sm:$0xff]
        %v395 = vld [vmem:[%s314 + $0x10] sm:$0xff]
        %v396 = vld [vmem:[%s314 + $0x18] sm:$0xff]
        %v397 = vld [vmem:[%s314 + $0x20] sm:$0xff]
        %v398 = vld [vmem:[%s314 + $0x28] sm:$0xff]
        %v399 = vld [vmem:[%s314 + $0x30] sm:$0xff]
        %v400 = vld [vmem:[%s314 + $0x38] sm:$0xff]
        %v401 = vld [vmem:[%s314 + $0x40] sm:$0xff]
        %v402 = vld [vmem:[%s314 + $0x48] sm:$0xff]
        %v403 = vld [vmem:[%s314 + $0x50] sm:$0xff]
        %v404 = vld [vmem:[%s314 + $0x58] sm:$0xff]
        %v405 = vld [vmem:[%s314 + $0x60] sm:$0xff]
        %v406 = vld [vmem:[%s314 + $0x68] sm:$0xff]
        %v407 = vld [vmem:[%s314 + $0x70] sm:$0xff]
        %v408 = vld [vmem:[%s314 + $0x78] sm:$0xff]
        %v409 = vld [vmem:[%s3] sm:$0x1]
        %v410 = vld [vmem:[%s4] sm:$0x1]
        %v411 = vld [vmem:[%s5] sm:$0x1]
        %v412 = vld [vmem:[%s6] sm:$0x1]
        %v414 = vlaneseq
        %v415 = vshrl.u32 %v414, 7
        %v416 = vsub.s32 0, %v415
        %v417 = vrot.slane %v409, %v416
        %v419 = vmul.f32 %v376, %v417
        %v420 = vmul.f32 %v377, %v417
        %v421 = vmul.f32 %v378, %v417
        %v422 = vmul.f32 %v379, %v417
        %v423 = vmul.f32 %v380, %v417
        %v424 = vmul.f32 %v381, %v417
        %v425 = vmul.f32 %v382, %v417
        %v426 = vmul.f32 %v383, %v417
        %v427 = vmul.f32 %v384, %v417
        %v428 = vmul.f32 %v385, %v417
        %v429 = vmul.f32 %v386, %v417
        %v430 = vmul.f32 %v387, %v417
        %v431 = vmul.f32 %v388, %v417
        %v432 = vmul.f32 %v389, %v417
        %v433 = vmul.f32 %v390, %v417
        %v434 = vmul.f32 %v391, %v417
        %v436 = vlaneseq
        %v437 = vshrl.u32 %v436, 7
        %v438 = vsub.s32 0, %v437
        %v439 = vrot.slane %v410, %v438
        %v441 = vmul.f32 %v392, %v439
        %v443 = vcombine.high %v441, %v441
        %v445 = vunpack.c.l.s4 1966171168
        %v446 = vunpack.c.0.s8 %v445
        %v447 = vlaneseq
        %v448 = vshrl.u32 %v447, 7
        %v449 = vsub.s32 %v446, %v448
        %v450 = vrot.slane %v441, %v449
        %v452 = vunpack.c.l.s4 1966171168
        %v453 = vunpack.c.0.s8 %v452
        %v454 = vlaneseq
        %v455 = vshrl.u32 %v454, 7
        %v456 = vsub.s32 %v453, %v455
        %v457 = vrot.slane %v443, %v456
        %v458 = vcombine.high %v450, %v450
        %v459 = vcombine.high %v457, %v457
        %v461 = vunpack.c.l.s4 1966171168
        %v462 = vunpack.c.0.s8 %v461
        %v463 = vlaneseq
        %v464 = vshrl.u32 %v463, 7
        %v465 = vsub.s32 %v462, %v464
        %v466 = vrot.slane %v450, %v465
        %v468 = vunpack.c.l.s4 1966171168
        %v469 = vunpack.c.0.s8 %v468
        %v470 = vlaneseq
        %v471 = vshrl.u32 %v470, 7
        %v472 = vsub.s32 %v469, %v471
        %v473 = vrot.slane %v457, %v472
        %v475 = vunpack.c.l.s4 1966171168
        %v476 = vunpack.c.0.s8 %v475
        %v477 = vlaneseq
        %v478 = vshrl.u32 %v477, 7
        %v479 = vsub.s32 %v476, %v478
        %v480 = vrot.slane %v458, %v479
        %v482 = vunpack.c.l.s4 1966171168
        %v483 = vunpack.c.0.s8 %v482
        %v484 = vlaneseq
        %v485 = vshrl.u32 %v484, 7
        %v486 = vsub.s32 %v483, %v485
        %v487 = vrot.slane %v459, %v486
        %v488 = vcombine.high %v466, %v466
        %v489 = vcombine.high %v473, %v473
        %v490 = vcombine.high %v480, %v480
        %v491 = vcombine.high %v487, %v487
        %v492 = vlaneseq
        %v493 = vshrl.u32 %v492, 7
        %v494 = vsub.s32 0, %v493
        %v495 = vrot.slane %v466, %v494
        %v496 = vlaneseq
        %v497 = vshrl.u32 %v496, 7
        %v498 = vsub.s32 0, %v497
        %v499 = vrot.slane %v480, %v498
        %v500 = vlaneseq
        %v501 = vshrl.u32 %v500, 7
        %v502 = vsub.s32 0, %v501
        %v503 = vrot.slane %v488, %v502
        %v504 = vlaneseq
        %v505 = vshrl.u32 %v504, 7
        %v506 = vsub.s32 0, %v505
        %v507 = vrot.slane %v490, %v506
        %v508 = vlaneseq
        %v509 = vshrl.u32 %v508, 7
        %v510 = vsub.s32 0, %v509
        %v511 = vrot.slane %v473, %v510
        %v512 = vlaneseq
        %v513 = vshrl.u32 %v512, 7
        %v514 = vsub.s32 0, %v513
        %v515 = vrot.slane %v487, %v514
        %v516 = vlaneseq
        %v517 = vshrl.u32 %v516, 7
        %v518 = vsub.s32 0, %v517
        %v519 = vrot.slane %v489, %v518
        %v520 = vlaneseq
        %v521 = vshrl.u32 %v520, 7
        %v522 = vsub.s32 0, %v521
        %v523 = vrot.slane %v491, %v522
        %v532 = vadd.f32 %v419, %v495
        %v533 = vadd.f32 %v420, %v495
        %v534 = vadd.f32 %v421, %v499
        %v535 = vadd.f32 %v422, %v499
        %v536 = vadd.f32 %v423, %v503
        %v537 = vadd.f32 %v424, %v503
        %v538 = vadd.f32 %v425, %v507
        %v539 = vadd.f32 %v426, %v507
        %v540 = vadd.f32 %v427, %v511
        %v541 = vadd.f32 %v428, %v511
        %v542 = vadd.f32 %v429, %v515
        %v543 = vadd.f32 %v430, %v515
        %v544 = vadd.f32 %v431, %v519
        %v545 = vadd.f32 %v432, %v519
        %v546 = vadd.f32 %v433, %v523
        %v547 = vadd.f32 %v434, %v523
        %v549 = vlaneseq
        %v550 = vshrl.u32 %v549, 7
        %v551 = vsub.s32 0, %v550
        %v552 = vrot.slane %v411, %v551
        %v554 = vmul.f32 %v376, %v552
        %v555 = vmul.f32 %v377, %v552
        %v556 = vmul.f32 %v378, %v552
        %v557 = vmul.f32 %v379, %v552
        %v558 = vmul.f32 %v380, %v552
        %v559 = vmul.f32 %v381, %v552
        %v560 = vmul.f32 %v382, %v552
        %v561 = vmul.f32 %v383, %v552
        %v562 = vmul.f32 %v384, %v552
        %v563 = vmul.f32 %v385, %v552
        %v564 = vmul.f32 %v386, %v552
        %v565 = vmul.f32 %v387, %v552
        %v566 = vmul.f32 %v388, %v552
        %v567 = vmul.f32 %v389, %v552
        %v568 = vmul.f32 %v390, %v552
        %v569 = vmul.f32 %v391, %v552
        %v571 = vlaneseq
        %v572 = vshrl.u32 %v571, 7
        %v573 = vsub.s32 0, %v572
        %v574 = vrot.slane %v412, %v573
        %v576 = vmul.f32 %v392, %v574
        %v578 = vcombine.high %v576, %v576
        %v580 = vunpack.c.l.s4 1966171168
        %v581 = vunpack.c.0.s8 %v580
        %v582 = vlaneseq
        %v583 = vshrl.u32 %v582, 7
        %v584 = vsub.s32 %v581, %v583
        %v585 = vrot.slane %v576, %v584
        %v587 = vunpack.c.l.s4 1966171168
        %v588 = vunpack.c.0.s8 %v587
        %v589 = vlaneseq
        %v590 = vshrl.u32 %v589, 7
        %v591 = vsub.s32 %v588, %v590
        %v592 = vrot.slane %v578, %v591
        %v593 = vcombine.high %v585, %v585
        %v594 = vcombine.high %v592, %v592
        %v596 = vunpack.c.l.s4 1966171168
        %v597 = vunpack.c.0.s8 %v596
        %v598 = vlaneseq
        %v599 = vshrl.u32 %v598, 7
        %v600 = vsub.s32 %v597, %v599
        %v601 = vrot.slane %v585, %v600
        %v603 = vunpack.c.l.s4 1966171168
        %v604 = vunpack.c.0.s8 %v603
        %v605 = vlaneseq
        %v606 = vshrl.u32 %v605, 7
        %v607 = vsub.s32 %v604, %v606
        %v608 = vrot.slane %v592, %v607
        %v610 = vunpack.c.l.s4 1966171168
        %v611 = vunpack.c.0.s8 %v610
        %v612 = vlaneseq
        %v613 = vshrl.u32 %v612, 7
        %v614 = vsub.s32 %v611, %v613
        %v615 = vrot.slane %v593, %v614
        %v617 = vunpack.c.l.s4 1966171168
        %v618 = vunpack.c.0.s8 %v617
        %v619 = vlaneseq
        %v620 = vshrl.u32 %v619, 7
        %v621 = vsub.s32 %v618, %v620
        %v622 = vrot.slane %v594, %v621
        %v623 = vcombine.high %v601, %v601
        %v624 = vcombine.high %v608, %v608
        %v625 = vcombine.high %v615, %v615
        %v626 = vcombine.high %v622, %v622
        %v627 = vlaneseq
        %v628 = vshrl.u32 %v627, 7
        %v629 = vsub.s32 0, %v628
        %v630 = vrot.slane %v601, %v629
        %v631 = vlaneseq
        %v632 = vshrl.u32 %v631, 7
        %v633 = vsub.s32 0, %v632
        %v634 = vrot.slane %v615, %v633
        %v635 = vlaneseq
        %v636 = vshrl.u32 %v635, 7
        %v637 = vsub.s32 0, %v636
        %v638 = vrot.slane %v623, %v637
        %v639 = vlaneseq
        %v640 = vshrl.u32 %v639, 7
        %v641 = vsub.s32 0, %v640
        %v642 = vrot.slane %v625, %v641
        %v643 = vlaneseq
        %v644 = vshrl.u32 %v643, 7
        %v645 = vsub.s32 0, %v644
        %v646 = vrot.slane %v608, %v645
        %v647 = vlaneseq
        %v648 = vshrl.u32 %v647, 7
        %v649 = vsub.s32 0, %v648
        %v650 = vrot.slane %v622, %v649
        %v651 = vlaneseq
        %v652 = vshrl.u32 %v651, 7
        %v653 = vsub.s32 0, %v652
        %v654 = vrot.slane %v624, %v653
        %v655 = vlaneseq
        %v656 = vshrl.u32 %v655, 7
        %v657 = vsub.s32 0, %v656
        %v658 = vrot.slane %v626, %v657
        %v667 = vadd.f32 %v554, %v630
        %v668 = vadd.f32 %v555, %v630
        %v669 = vadd.f32 %v556, %v634
        %v670 = vadd.f32 %v557, %v634
        %v671 = vadd.f32 %v558, %v638
        %v672 = vadd.f32 %v559, %v638
        %v673 = vadd.f32 %v560, %v642
        %v674 = vadd.f32 %v561, %v642
        %v675 = vadd.f32 %v562, %v646
        %v676 = vadd.f32 %v563, %v646
        %v677 = vadd.f32 %v564, %v650
        %v678 = vadd.f32 %v565, %v650
        %v679 = vadd.f32 %v566, %v654
        %v680 = vadd.f32 %v567, %v654
        %v681 = vadd.f32 %v568, %v658
        %v682 = vadd.f32 %v569, %v658
        %683 = vmatprep.subr.mxu0 0.0
        %684 = vmatpush1.xpose.msra.mxu0 %v376
        %685 = vmatprep.subr.mxu0 0.0
        %686 = vmatpush1.xpose.msra.mxu0 %v377
        %687 = vmatprep.subr.mxu0 0.0
        %688 = vmatpush1.xpose.msra.mxu0 0.0
        %689 = vmatprep.subr.mxu0 0.0
        %690 = vmatpush1.xpose.msra.mxu0 0.0
        %691 = vmatprep.subr.mxu0 0.0
        %692 = vmatpush1.xpose.msra.mxu0 0.0
        %693 = vmatprep.subr.mxu0 0.0
        %694 = vmatpush1.xpose.msra.mxu0 0.0
        %695 = vmatprep.subr.mxu0 0.0
        %696 = vmatpush1.xpose.msra.mxu0 0.0
        %697 = vmatprep.subr.mxu0 0.0
        %698 = vmatpush1.xpose.msra.mxu0 0.0
        %699 = vmatprep.subr.mxu0 0.0
        %700 = vmatpush1.xpose.msra.mxu0 0.0
        %701 = vmatprep.subr.mxu0 0.0
        %702 = vmatpush1.xpose.msra.mxu0 0.0
        %703 = vmatprep.subr.mxu0 0.0
        %704 = vmatpush1.xpose.msra.mxu0 0.0
        %705 = vmatprep.subr.mxu0 0.0
        %706 = vmatpush1.xpose.msra.mxu0 0.0
        %707 = vmatprep.subr.mxu0 0.0
        %708 = vmatpush1.xpose.msra.mxu0 0.0
        %709 = vmatprep.subr.mxu0 0.0
        %710 = vmatpush1.xpose.msra.mxu0 0.0
        %711 = vmatprep.subr.mxu0 0.0
        %712 = vmatpush1.xpose.msra.mxu0 0.0
        %713 = vmatprep.subr.mxu0 0.0
        %714 = vmatpush1.xpose.msra.mxu0 0.0
        %715 = vmatprep.subr.mxu0 0.0
        %716 = vmatpush1.xpose.msra.mxu0 0.0
        %717 = vmatprep.subr.mxu0 0.0
        %718 = vmatpush1.xpose.msra.mxu0 0.0
        %719 = vmatprep.subr.mxu0 0.0
        %720 = vmatpush1.xpose.msra.mxu0 0.0
        %721 = vmatprep.subr.mxu0 0.0
        %722 = vmatpush1.xpose.msra.mxu0 0.0
        %723 = vmatprep.subr.mxu0 0.0
        %724 = vmatpush1.xpose.msra.mxu0 0.0
        %725 = vmatprep.subr.mxu0 0.0
        %726 = vmatpush1.xpose.msra.mxu0 0.0
        %727 = vmatprep.subr.mxu0 0.0
        %728 = vmatpush1.xpose.msra.mxu0 0.0
        %729 = vmatprep.subr.mxu0 0.0
        %730 = vmatpush1.xpose.msra.mxu0 0.0
        %731 = vmatprep.subr.mxu0 0.0
        %732 = vmatpush1.xpose.msra.mxu0 0.0
        %733 = vmatprep.subr.mxu0 0.0
        %734 = vmatpush1.xpose.msra.mxu0 0.0
        %735 = vmatprep.subr.mxu0 0.0
        %736 = vmatpush1.xpose.msra.mxu0 0.0
        %737 = vmatprep.subr.mxu0 0.0
        %738 = vmatpush1.xpose.msra.mxu0 0.0
        %739 = vmatprep.subr.mxu0 0.0
        %740 = vmatpush1.xpose.msra.mxu0 0.0
        %741 = vmatprep.subr.mxu0 0.0
        %742 = vmatpush1.xpose.msra.mxu0 0.0
        %743 = vmatprep.subr.mxu0 0.0
        %744 = vmatpush1.xpose.msra.mxu0 0.0
        %745 = vmatprep.subr.mxu0 0.0
        %746 = vmatpush1.xpose.msra.mxu0 0.0
        %747 = vmatprep.mubr.f32.mxu0 0.0
        %748 = vmatmul.mubr.f32.gmra.mrb[0].mxu0 %v532
        %v749 = vpop.f32.mrb[0].mxu0
        %v750 = vadd.f32 0.0, %v749
        %v751 = vpop.f32.mrb[0].mxu0
        %752 = vmatprep.mubr.f32.mxu0 0.0
        %753 = vmatmul.mubr.f32.gmra.mrb[0].mxu0 %v533
        %v754 = vpop.f32.mrb[0].mxu0
        %v755 = vadd.f32 0.0, %v754
        %v756 = vpop.f32.mrb[0].mxu0
        %757 = vdwg.mxu0
        %758 = vmatprep.subr.mxu0 0.0
        %759 = vmatpush1.xpose.msra.mxu0 %v378
        %760 = vmatprep.subr.mxu0 0.0
        %761 = vmatpush1.xpose.msra.mxu0 %v379
        %762 = vmatprep.subr.mxu0 0.0
        %763 = vmatpush1.xpose.msra.mxu0 0.0
        %764 = vmatprep.subr.mxu0 0.0
        %765 = vmatpush1.xpose.msra.mxu0 0.0
        %766 = vmatprep.subr.mxu0 0.0
        %767 = vmatpush1.xpose.msra.mxu0 0.0
        %768 = vmatprep.subr.mxu0 0.0
        %769 = vmatpush1.xpose.msra.mxu0 0.0
        %770 = vmatprep.subr.mxu0 0.0
        %771 = vmatpush1.xpose.msra.mxu0 0.0
        %772 = vmatprep.subr.mxu0 0.0
        %773 = vmatpush1.xpose.msra.mxu0 0.0
        %774 = vmatprep.subr.mxu0 0.0
        %775 = vmatpush1.xpose.msra.mxu0 0.0
        %776 = vmatprep.subr.mxu0 0.0
        %777 = vmatpush1.xpose.msra.mxu0 0.0
        %778 = vmatprep.subr.mxu0 0.0
        %779 = vmatpush1.xpose.msra.mxu0 0.0
        %780 = vmatprep.subr.mxu0 0.0
        %781 = vmatpush1.xpose.msra.mxu0 0.0
        %782 = vmatprep.subr.mxu0 0.0
        %783 = vmatpush1.xpose.msra.mxu0 0.0
        %784 = vmatprep.subr.mxu0 0.0
        %785 = vmatpush1.xpose.msra.mxu0 0.0
        %786 = vmatprep.subr.mxu0 0.0
        %787 = vmatpush1.xpose.msra.mxu0 0.0
        %788 = vmatprep.subr.mxu0 0.0
        %789 = vmatpush1.xpose.msra.mxu0 0.0
        %790 = vmatprep.subr.mxu0 0.0
        %791 = vmatpush1.xpose.msra.mxu0 0.0
        %792 = vmatprep.subr.mxu0 0.0
        %793 = vmatpush1.xpose.msra.mxu0 0.0
        %794 = vmatprep.subr.mxu0 0.0
        %795 = vmatpush1.xpose.msra.mxu0 0.0
        %796 = vmatprep.subr.mxu0 0.0
        %797 = vmatpush1.xpose.msra.mxu0 0.0
        %798 = vmatprep.subr.mxu0 0.0
        %799 = vmatpush1.xpose.msra.mxu0 0.0
        %800 = vmatprep.subr.mxu0 0.0
        %801 = vmatpush1.xpose.msra.mxu0 0.0
        %802 = vmatprep.subr.mxu0 0.0
        %803 = vmatpush1.xpose.msra.mxu0 0.0
        %804 = vmatprep.subr.mxu0 0.0
        %805 = vmatpush1.xpose.msra.mxu0 0.0
        %806 = vmatprep.subr.mxu0 0.0
        %807 = vmatpush1.xpose.msra.mxu0 0.0
        %808 = vmatprep.subr.mxu0 0.0
        %809 = vmatpush1.xpose.msra.mxu0 0.0
        %810 = vmatprep.subr.mxu0 0.0
        %811 = vmatpush1.xpose.msra.mxu0 0.0
        %812 = vmatprep.subr.mxu0 0.0
        %813 = vmatpush1.xpose.msra.mxu0 0.0
        %814 = vmatprep.subr.mxu0 0.0
        %815 = vmatpush1.xpose.msra.mxu0 0.0
        %816 = vmatprep.subr.mxu0 0.0
        %817 = vmatpush1.xpose.msra.mxu0 0.0
        %818 = vmatprep.subr.mxu0 0.0
        %819 = vmatpush1.xpose.msra.mxu0 0.0
        %820 = vmatprep.subr.mxu0 0.0
        %821 = vmatpush1.xpose.msra.mxu0 0.0
        %822 = vmatprep.mubr.f32.mxu0 0.0
        %823 = vmatmul.mubr.f32.gmra.mrb[0].mxu0 %v534
        %v824 = vpop.f32.mrb[0].mxu0
        %v825 = vadd.f32 0.0, %v824
        %v826 = vpop.f32.mrb[0].mxu0
        %827 = vmatprep.mubr.f32.mxu0 0.0
        %828 = vmatmul.mubr.f32.gmra.mrb[0].mxu0 %v535
        %v829 = vpop.f32.mrb[0].mxu0
        %v830 = vadd.f32 0.0, %v829
        %v831 = vpop.f32.mrb[0].mxu0
        %832 = vdwg.mxu0
        %833 = vmatprep.subr.mxu0 0.0
        %834 = vmatpush1.xpose.msra.mxu0 %v380
        %835 = vmatprep.subr.mxu0 0.0
        %836 = vmatpush1.xpose.msra.mxu0 %v381
        %837 = vmatprep.subr.mxu0 0.0
        %838 = vmatpush1.xpose.msra.mxu0 0.0
        %839 = vmatprep.subr.mxu0 0.0
        %840 = vmatpush1.xpose.msra.mxu0 0.0
        %841 = vmatprep.subr.mxu0 0.0
        %842 = vmatpush1.xpose.msra.mxu0 0.0
        %843 = vmatprep.subr.mxu0 0.0
        %844 = vmatpush1.xpose.msra.mxu0 0.0
        %845 = vmatprep.subr.mxu0 0.0
        %846 = vmatpush1.xpose.msra.mxu0 0.0
        %847 = vmatprep.subr.mxu0 0.0
        %848 = vmatpush1.xpose.msra.mxu0 0.0
        %849 = vmatprep.subr.mxu0 0.0
        %850 = vmatpush1.xpose.msra.mxu0 0.0
        %851 = vmatprep.subr.mxu0 0.0
        %852 = vmatpush1.xpose.msra.mxu0 0.0
        %853 = vmatprep.subr.mxu0 0.0
        %854 = vmatpush1.xpose.msra.mxu0 0.0
        %855 = vmatprep.subr.mxu0 0.0
        %856 = vmatpush1.xpose.msra.mxu0 0.0
        %857 = vmatprep.subr.mxu0 0.0
        %858 = vmatpush1.xpose.msra.mxu0 0.0
        %859 = vmatprep.subr.mxu0 0.0
        %860 = vmatpush1.xpose.msra.mxu0 0.0
        %861 = vmatprep.subr.mxu0 0.0
        %862 = vmatpush1.xpose.msra.mxu0 0.0
        %863 = vmatprep.subr.mxu0 0.0
        %864 = vmatpush1.xpose.msra.mxu0 0.0
        %865 = vmatprep.subr.mxu0 0.0
        %866 = vmatpush1.xpose.msra.mxu0 0.0
        %867 = vmatprep.subr.mxu0 0.0
        %868 = vmatpush1.xpose.msra.mxu0 0.0
        %869 = vmatprep.subr.mxu0 0.0
        %870 = vmatpush1.xpose.msra.mxu0 0.0
        %871 = vmatprep.subr.mxu0 0.0
        %872 = vmatpush1.xpose.msra.mxu0 0.0
        %873 = vmatprep.subr.mxu0 0.0
        %874 = vmatpush1.xpose.msra.mxu0 0.0
        %875 = vmatprep.subr.mxu0 0.0
        %876 = vmatpush1.xpose.msra.mxu0 0.0
        %877 = vmatprep.subr.mxu0 0.0
        %878 = vmatpush1.xpose.msra.mxu0 0.0
        %879 = vmatprep.subr.mxu0 0.0
        %880 = vmatpush1.xpose.msra.mxu0 0.0
        %881 = vmatprep.subr.mxu0 0.0
        %882 = vmatpush1.xpose.msra.mxu0 0.0
        %883 = vmatprep.subr.mxu0 0.0
        %884 = vmatpush1.xpose.msra.mxu0 0.0
        %885 = vmatprep.subr.mxu0 0.0
        %886 = vmatpush1.xpose.msra.mxu0 0.0
        %887 = vmatprep.subr.mxu0 0.0
        %888 = vmatpush1.xpose.msra.mxu0 0.0
        %889 = vmatprep.subr.mxu0 0.0
        %890 = vmatpush1.xpose.msra.mxu0 0.0
        %891 = vmatprep.subr.mxu0 0.0
        %892 = vmatpush1.xpose.msra.mxu0 0.0
        %893 = vmatprep.subr.mxu0 0.0
        %894 = vmatpush1.xpose.msra.mxu0 0.0
        %895 = vmatprep.subr.mxu0 0.0
        %896 = vmatpush1.xpose.msra.mxu0 0.0
        %897 = vmatprep.mubr.f32.mxu0 0.0
        %898 = vmatmul.mubr.f32.gmra.mrb[0].mxu0 %v536
        %v899 = vpop.f32.mrb[0].mxu0
        %v900 = vadd.f32 0.0, %v899
        %v901 = vpop.f32.mrb[0].mxu0
        %902 = vmatprep.mubr.f32.mxu0 0.0
        %903 = vmatmul.mubr.f32.gmra.mrb[0].mxu0 %v537
        %v904 = vpop.f32.mrb[0].mxu0
        %v905 = vadd.f32 0.0, %v904
        %v906 = vpop.f32.mrb[0].mxu0
        %907 = vdwg.mxu0
        %908 = vmatprep.subr.mxu0 0.0
        %909 = vmatpush1.xpose.msra.mxu0 %v382
        %910 = vmatprep.subr.mxu0 0.0
        %911 = vmatpush1.xpose.msra.mxu0 %v383
        %912 = vmatprep.subr.mxu0 0.0
        %913 = vmatpush1.xpose.msra.mxu0 0.0
        %914 = vmatprep.subr.mxu0 0.0
        %915 = vmatpush1.xpose.msra.mxu0 0.0
        %916 = vmatprep.subr.mxu0 0.0
        %917 = vmatpush1.xpose.msra.mxu0 0.0
        %918 = vmatprep.subr.mxu0 0.0
        %919 = vmatpush1.xpose.msra.mxu0 0.0
        %920 = vmatprep.subr.mxu0 0.0
        %921 = vmatpush1.xpose.msra.mxu0 0.0
        %922 = vmatprep.subr.mxu0 0.0
        %923 = vmatpush1.xpose.msra.mxu0 0.0
        %924 = vmatprep.subr.mxu0 0.0
        %925 = vmatpush1.xpose.msra.mxu0 0.0
        %926 = vmatprep.subr.mxu0 0.0
        %927 = vmatpush1.xpose.msra.mxu0 0.0
        %928 = vmatprep.subr.mxu0 0.0
        %929 = vmatpush1.xpose.msra.mxu0 0.0
        %930 = vmatprep.subr.mxu0 0.0
        %931 = vmatpush1.xpose.msra.mxu0 0.0
        %932 = vmatprep.subr.mxu0 0.0
        %933 = vmatpush1.xpose.msra.mxu0 0.0
        %934 = vmatprep.subr.mxu0 0.0
        %935 = vmatpush1.xpose.msra.mxu0 0.0
        %936 = vmatprep.subr.mxu0 0.0
        %937 = vmatpush1.xpose.msra.mxu0 0.0
        %938 = vmatprep.subr.mxu0 0.0
        %939 = vmatpush1.xpose.msra.mxu0 0.0
        %940 = vmatprep.subr.mxu0 0.0
        %941 = vmatpush1.xpose.msra.mxu0 0.0
        %942 = vmatprep.subr.mxu0 0.0
        %943 = vmatpush1.xpose.msra.mxu0 0.0
        %944 = vmatprep.subr.mxu0 0.0
        %945 = vmatpush1.xpose.msra.mxu0 0.0
        %946 = vmatprep.subr.mxu0 0.0
        %947 = vmatpush1.xpose.msra.mxu0 0.0
        %948 = vmatprep.subr.mxu0 0.0
        %949 = vmatpush1.xpose.msra.mxu0 0.0
        %950 = vmatprep.subr.mxu0 0.0
        %951 = vmatpush1.xpose.msra.mxu0 0.0
        %952 = vmatprep.subr.mxu0 0.0
        %953 = vmatpush1.xpose.msra.mxu0 0.0
        %954 = vmatprep.subr.mxu0 0.0
        %955 = vmatpush1.xpose.msra.mxu0 0.0
        %956 = vmatprep.subr.mxu0 0.0
        %957 = vmatpush1.xpose.msra.mxu0 0.0
        %958 = vmatprep.subr.mxu0 0.0
        %959 = vmatpush1.xpose.msra.mxu0 0.0
        %960 = vmatprep.subr.mxu0 0.0
        %961 = vmatpush1.xpose.msra.mxu0 0.0
        %962 = vmatprep.subr.mxu0 0.0
        %963 = vmatpush1.xpose.msra.mxu0 0.0
        %964 = vmatprep.subr.mxu0 0.0
        %965 = vmatpush1.xpose.msra.mxu0 0.0
        %966 = vmatprep.subr.mxu0 0.0
        %967 = vmatpush1.xpose.msra.mxu0 0.0
        %968 = vmatprep.subr.mxu0 0.0
        %969 = vmatpush1.xpose.msra.mxu0 0.0
        %970 = vmatprep.subr.mxu0 0.0
        %971 = vmatpush1.xpose.msra.mxu0 0.0
        %972 = vmatprep.mubr.f32.mxu0 0.0
        %973 = vmatmul.mubr.f32.gmra.mrb[0].mxu0 %v538
        %v974 = vpop.f32.mrb[0].mxu0
        %v975 = vadd.f32 0.0, %v974
        %v976 = vpop.f32.mrb[0].mxu0
        %977 = vmatprep.mubr.f32.mxu0 0.0
        %978 = vmatmul.mubr.f32.gmra.mrb[0].mxu0 %v539
        %v979 = vpop.f32.mrb[0].mxu0
        %v980 = vadd.f32 0.0, %v979
        %v981 = vpop.f32.mrb[0].mxu0
        %982 = vdwg.mxu0
        %983 = vmatprep.subr.mxu0 0.0
        %984 = vmatpush1.xpose.msra.mxu0 %v384
        %985 = vmatprep.subr.mxu0 0.0
        %986 = vmatpush1.xpose.msra.mxu0 %v385
        %987 = vmatprep.subr.mxu0 0.0
        %988 = vmatpush1.xpose.msra.mxu0 0.0
        %989 = vmatprep.subr.mxu0 0.0
        %990 = vmatpush1.xpose.msra.mxu0 0.0
        %991 = vmatprep.subr.mxu0 0.0
        %992 = vmatpush1.xpose.msra.mxu0 0.0
        %993 = vmatprep.subr.mxu0 0.0
        %994 = vmatpush1.xpose.msra.mxu0 0.0
        %995 = vmatprep.subr.mxu0 0.0
        %996 = vmatpush1.xpose.msra.mxu0 0.0
        %997 = vmatprep.subr.mxu0 0.0
        %998 = vmatpush1.xpose.msra.mxu0 0.0
        %999 = vmatprep.subr.mxu0 0.0
        %1000 = vmatpush1.xpose.msra.mxu0 0.0
        %1001 = vmatprep.subr.mxu0 0.0
        %1002 = vmatpush1.xpose.msra.mxu0 0.0
        %1003 = vmatprep.subr.mxu0 0.0
        %1004 = vmatpush1.xpose.msra.mxu0 0.0
        %1005 = vmatprep.subr.mxu0 0.0
        %1006 = vmatpush1.xpose.msra.mxu0 0.0
        %1007 = vmatprep.subr.mxu0 0.0
        %1008 = vmatpush1.xpose.msra.mxu0 0.0
        %1009 = vmatprep.subr.mxu0 0.0
        %1010 = vmatpush1.xpose.msra.mxu0 0.0
        %1011 = vmatprep.subr.mxu0 0.0
        %1012 = vmatpush1.xpose.msra.mxu0 0.0
        %1013 = vmatprep.subr.mxu0 0.0
        %1014 = vmatpush1.xpose.msra.mxu0 0.0
        %1015 = vmatprep.subr.mxu0 0.0
        %1016 = vmatpush1.xpose.msra.mxu0 0.0
        %1017 = vmatprep.subr.mxu0 0.0
        %1018 = vmatpush1.xpose.msra.mxu0 0.0
        %1019 = vmatprep.subr.mxu0 0.0
        %1020 = vmatpush1.xpose.msra.mxu0 0.0
        %1021 = vmatprep.subr.mxu0 0.0
        %1022 = vmatpush1.xpose.msra.mxu0 0.0
        %1023 = vmatprep.subr.mxu0 0.0
        %1024 = vmatpush1.xpose.msra.mxu0 0.0
        %1025 = vmatprep.subr.mxu0 0.0
        %1026 = vmatpush1.xpose.msra.mxu0 0.0
        %1027 = vmatprep.subr.mxu0 0.0
        %1028 = vmatpush1.xpose.msra.mxu0 0.0
        %1029 = vmatprep.subr.mxu0 0.0
        %1030 = vmatpush1.xpose.msra.mxu0 0.0
        %1031 = vmatprep.subr.mxu0 0.0
        %1032 = vmatpush1.xpose.msra.mxu0 0.0
        %1033 = vmatprep.subr.mxu0 0.0
        %1034 = vmatpush1.xpose.msra.mxu0 0.0
        %1035 = vmatprep.subr.mxu0 0.0
        %1036 = vmatpush1.xpose.msra.mxu0 0.0
        %1037 = vmatprep.subr.mxu0 0.0
        %1038 = vmatpush1.xpose.msra.mxu0 0.0
        %1039 = vmatprep.subr.mxu0 0.0
        %1040 = vmatpush1.xpose.msra.mxu0 0.0
        %1041 = vmatprep.subr.mxu0 0.0
        %1042 = vmatpush1.xpose.msra.mxu0 0.0
        %1043 = vmatprep.subr.mxu0 0.0
        %1044 = vmatpush1.xpose.msra.mxu0 0.0
        %1045 = vmatprep.subr.mxu0 0.0
        %1046 = vmatpush1.xpose.msra.mxu0 0.0
        %1047 = vmatprep.mubr.f32.mxu0 0.0
        %1048 = vmatmul.mubr.f32.gmra.mrb[0].mxu0 %v540
        %v1049 = vpop.f32.mrb[0].mxu0
        %v1050 = vadd.f32 0.0, %v1049
        %v1051 = vpop.f32.mrb[0].mxu0
        %1052 = vmatprep.mubr.f32.mxu0 0.0
        %1053 = vmatmul.mubr.f32.gmra.mrb[0].mxu0 %v541
        %v1054 = vpop.f32.mrb[0].mxu0
        %v1055 = vadd.f32 0.0, %v1054
        %v1056 = vpop.f32.mrb[0].mxu0
        %1057 = vdwg.mxu0
        %1058 = vmatprep.subr.mxu0 0.0
        %1059 = vmatpush1.xpose.msra.mxu0 %v386
        %1060 = vmatprep.subr.mxu0 0.0
        %1061 = vmatpush1.xpose.msra.mxu0 %v387
        %1062 = vmatprep.subr.mxu0 0.0
        %1063 = vmatpush1.xpose.msra.mxu0 0.0
        %1064 = vmatprep.subr.mxu0 0.0
        %1065 = vmatpush1.xpose.msra.mxu0 0.0
        %1066 = vmatprep.subr.mxu0 0.0
        %1067 = vmatpush1.xpose.msra.mxu0 0.0
        %1068 = vmatprep.subr.mxu0 0.0
        %1069 = vmatpush1.xpose.msra.mxu0 0.0
        %1070 = vmatprep.subr.mxu0 0.0
        %1071 = vmatpush1.xpose.msra.mxu0 0.0
        %1072 = vmatprep.subr.mxu0 0.0
        %1073 = vmatpush1.xpose.msra.mxu0 0.0
        %1074 = vmatprep.subr.mxu0 0.0
        %1075 = vmatpush1.xpose.msra.mxu0 0.0
        %1076 = vmatprep.subr.mxu0 0.0
        %1077 = vmatpush1.xpose.msra.mxu0 0.0
        %1078 = vmatprep.subr.mxu0 0.0
        %1079 = vmatpush1.xpose.msra.mxu0 0.0
        %1080 = vmatprep.subr.mxu0 0.0
        %1081 = vmatpush1.xpose.msra.mxu0 0.0
        %1082 = vmatprep.subr.mxu0 0.0
        %1083 = vmatpush1.xpose.msra.mxu0 0.0
        %1084 = vmatprep.subr.mxu0 0.0
        %1085 = vmatpush1.xpose.msra.mxu0 0.0
        %1086 = vmatprep.subr.mxu0 0.0
        %1087 = vmatpush1.xpose.msra.mxu0 0.0
        %1088 = vmatprep.subr.mxu0 0.0
        %1089 = vmatpush1.xpose.msra.mxu0 0.0
        %1090 = vmatprep.subr.mxu0 0.0
        %1091 = vmatpush1.xpose.msra.mxu0 0.0
        %1092 = vmatprep.subr.mxu0 0.0
        %1093 = vmatpush1.xpose.msra.mxu0 0.0
        %1094 = vmatprep.subr.mxu0 0.0
        %1095 = vmatpush1.xpose.msra.mxu0 0.0
        %1096 = vmatprep.subr.mxu0 0.0
        %1097 = vmatpush1.xpose.msra.mxu0 0.0
        %1098 = vmatprep.subr.mxu0 0.0
        %1099 = vmatpush1.xpose.msra.mxu0 0.0
        %1100 = vmatprep.subr.mxu0 0.0
        %1101 = vmatpush1.xpose.msra.mxu0 0.0
        %1102 = vmatprep.subr.mxu0 0.0
        %1103 = vmatpush1.xpose.msra.mxu0 0.0
        %1104 = vmatprep.subr.mxu0 0.0
        %1105 = vmatpush1.xpose.msra.mxu0 0.0
        %1106 = vmatprep.subr.mxu0 0.0
        %1107 = vmatpush1.xpose.msra.mxu0 0.0
        %1108 = vmatprep.subr.mxu0 0.0
        %1109 = vmatpush1.xpose.msra.mxu0 0.0
        %1110 = vmatprep.subr.mxu0 0.0
        %1111 = vmatpush1.xpose.msra.mxu0 0.0
        %1112 = vmatprep.subr.mxu0 0.0
        %1113 = vmatpush1.xpose.msra.mxu0 0.0
        %1114 = vmatprep.subr.mxu0 0.0
        %1115 = vmatpush1.xpose.msra.mxu0 0.0
        %1116 = vmatprep.subr.mxu0 0.0
        %1117 = vmatpush1.xpose.msra.mxu0 0.0
        %1118 = vmatprep.subr.mxu0 0.0
        %1119 = vmatpush1.xpose.msra.mxu0 0.0
        %1120 = vmatprep.subr.mxu0 0.0
        %1121 = vmatpush1.xpose.msra.mxu0 0.0
        %1122 = vmatprep.mubr.f32.mxu0 0.0
        %1123 = vmatmul.mubr.f32.gmra.mrb[0].mxu0 %v542
        %v1124 = vpop.f32.mrb[0].mxu0
        %v1125 = vadd.f32 0.0, %v1124
        %v1126 = vpop.f32.mrb[0].mxu0
        %1127 = vmatprep.mubr.f32.mxu0 0.0
        %1128 = vmatmul.mubr.f32.gmra.mrb[0].mxu0 %v543
        %v1129 = vpop.f32.mrb[0].mxu0
        %v1130 = vadd.f32 0.0, %v1129
        %v1131 = vpop.f32.mrb[0].mxu0
        %1132 = vdwg.mxu0
        %1133 = vmatprep.subr.mxu0 0.0
        %1134 = vmatpush1.xpose.msra.mxu0 %v388
        %1135 = vmatprep.subr.mxu0 0.0
        %1136 = vmatpush1.xpose.msra.mxu0 %v389
        %1137 = vmatprep.subr.mxu0 0.0
        %1138 = vmatpush1.xpose.msra.mxu0 0.0
        %1139 = vmatprep.subr.mxu0 0.0
        %1140 = vmatpush1.xpose.msra.mxu0 0.0
        %1141 = vmatprep.subr.mxu0 0.0
        %1142 = vmatpush1.xpose.msra.mxu0 0.0
        %1143 = vmatprep.subr.mxu0 0.0
        %1144 = vmatpush1.xpose.msra.mxu0 0.0
        %1145 = vmatprep.subr.mxu0 0.0
        %1146 = vmatpush1.xpose.msra.mxu0 0.0
        %1147 = vmatprep.subr.mxu0 0.0
        %1148 = vmatpush1.xpose.msra.mxu0 0.0
        %1149 = vmatprep.subr.mxu0 0.0
        %1150 = vmatpush1.xpose.msra.mxu0 0.0
        %1151 = vmatprep.subr.mxu0 0.0
        %1152 = vmatpush1.xpose.msra.mxu0 0.0
        %1153 = vmatprep.subr.mxu0 0.0
        %1154 = vmatpush1.xpose.msra.mxu0 0.0
        %1155 = vmatprep.subr.mxu0 0.0
        %1156 = vmatpush1.xpose.msra.mxu0 0.0
        %1157 = vmatprep.subr.mxu0 0.0
        %1158 = vmatpush1.xpose.msra.mxu0 0.0
        %1159 = vmatprep.subr.mxu0 0.0
        %1160 = vmatpush1.xpose.msra.mxu0 0.0
        %1161 = vmatprep.subr.mxu0 0.0
        %1162 = vmatpush1.xpose.msra.mxu0 0.0
        %1163 = vmatprep.subr.mxu0 0.0
        %1164 = vmatpush1.xpose.msra.mxu0 0.0
        %1165 = vmatprep.subr.mxu0 0.0
        %1166 = vmatpush1.xpose.msra.mxu0 0.0
        %1167 = vmatprep.subr.mxu0 0.0
        %1168 = vmatpush1.xpose.msra.mxu0 0.0
        %1169 = vmatprep.subr.mxu0 0.0
        %1170 = vmatpush1.xpose.msra.mxu0 0.0
        %1171 = vmatprep.subr.mxu0 0.0
        %1172 = vmatpush1.xpose.msra.mxu0 0.0
        %1173 = vmatprep.subr.mxu0 0.0
        %1174 = vmatpush1.xpose.msra.mxu0 0.0
        %1175 = vmatprep.subr.mxu0 0.0
        %1176 = vmatpush1.xpose.msra.mxu0 0.0
        %1177 = vmatprep.subr.mxu0 0.0
        %1178 = vmatpush1.xpose.msra.mxu0 0.0
        %1179 = vmatprep.subr.mxu0 0.0
        %1180 = vmatpush1.xpose.msra.mxu0 0.0
        %1181 = vmatprep.subr.mxu0 0.0
        %1182 = vmatpush1.xpose.msra.mxu0 0.0
        %1183 = vmatprep.subr.mxu0 0.0
        %1184 = vmatpush1.xpose.msra.mxu0 0.0
        %1185 = vmatprep.subr.mxu0 0.0
        %1186 = vmatpush1.xpose.msra.mxu0 0.0
        %1187 = vmatprep.subr.mxu0 0.0
        %1188 = vmatpush1.xpose.msra.mxu0 0.0
        %1189 = vmatprep.subr.mxu0 0.0
        %1190 = vmatpush1.xpose.msra.mxu0 0.0
        %1191 = vmatprep.subr.mxu0 0.0
        %1192 = vmatpush1.xpose.msra.mxu0 0.0
        %1193 = vmatprep.subr.mxu0 0.0
        %1194 = vmatpush1.xpose.msra.mxu0 0.0
        %1195 = vmatprep.subr.mxu0 0.0
        %1196 = vmatpush1.xpose.msra.mxu0 0.0
        %1197 = vmatprep.mubr.f32.mxu0 0.0
        %1198 = vmatmul.mubr.f32.gmra.mrb[0].mxu0 %v544
        %v1199 = vpop.f32.mrb[0].mxu0
        %v1200 = vadd.f32 0.0, %v1199
        %v1201 = vpop.f32.mrb[0].mxu0
        %1202 = vmatprep.mubr.f32.mxu0 0.0
        %1203 = vmatmul.mubr.f32.gmra.mrb[0].mxu0 %v545
        %v1204 = vpop.f32.mrb[0].mxu0
        %v1205 = vadd.f32 0.0, %v1204
        %v1206 = vpop.f32.mrb[0].mxu0
        %1207 = vdwg.mxu0
        %1208 = vmatprep.subr.mxu0 0.0
        %1209 = vmatpush1.xpose.msra.mxu0 %v390
        %1210 = vmatprep.subr.mxu0 0.0
        %1211 = vmatpush1.xpose.msra.mxu0 %v391
        %1212 = vmatprep.subr.mxu0 0.0
        %1213 = vmatpush1.xpose.msra.mxu0 0.0
        %1214 = vmatprep.subr.mxu0 0.0
        %1215 = vmatpush1.xpose.msra.mxu0 0.0
        %1216 = vmatprep.subr.mxu0 0.0
        %1217 = vmatpush1.xpose.msra.mxu0 0.0
        %1218 = vmatprep.subr.mxu0 0.0
        %1219 = vmatpush1.xpose.msra.mxu0 0.0
        %1220 = vmatprep.subr.mxu0 0.0
        %1221 = vmatpush1.xpose.msra.mxu0 0.0
        %1222 = vmatprep.subr.mxu0 0.0
        %1223 = vmatpush1.xpose.msra.mxu0 0.0
        %1224 = vmatprep.subr.mxu0 0.0
        %1225 = vmatpush1.xpose.msra.mxu0 0.0
        %1226 = vmatprep.subr.mxu0 0.0
        %1227 = vmatpush1.xpose.msra.mxu0 0.0
        %1228 = vmatprep.subr.mxu0 0.0
        %1229 = vmatpush1.xpose.msra.mxu0 0.0
        %1230 = vmatprep.subr.mxu0 0.0
        %1231 = vmatpush1.xpose.msra.mxu0 0.0
        %1232 = vmatprep.subr.mxu0 0.0
        %1233 = vmatpush1.xpose.msra.mxu0 0.0
        %1234 = vmatprep.subr.mxu0 0.0
        %1235 = vmatpush1.xpose.msra.mxu0 0.0
        %1236 = vmatprep.subr.mxu0 0.0
        %1237 = vmatpush1.xpose.msra.mxu0 0.0
        %1238 = vmatprep.subr.mxu0 0.0
        %1239 = vmatpush1.xpose.msra.mxu0 0.0
        %1240 = vmatprep.subr.mxu0 0.0
        %1241 = vmatpush1.xpose.msra.mxu0 0.0
        %1242 = vmatprep.subr.mxu0 0.0
        %1243 = vmatpush1.xpose.msra.mxu0 0.0
        %1244 = vmatprep.subr.mxu0 0.0
        %1245 = vmatpush1.xpose.msra.mxu0 0.0
        %1246 = vmatprep.subr.mxu0 0.0
        %1247 = vmatpush1.xpose.msra.mxu0 0.0
        %1248 = vmatprep.subr.mxu0 0.0
        %1249 = vmatpush1.xpose.msra.mxu0 0.0
        %1250 = vmatprep.subr.mxu0 0.0
        %1251 = vmatpush1.xpose.msra.mxu0 0.0
        %1252 = vmatprep.subr.mxu0 0.0
        %1253 = vmatpush1.xpose.msra.mxu0 0.0
        %1254 = vmatprep.subr.mxu0 0.0
        %1255 = vmatpush1.xpose.msra.mxu0 0.0
        %1256 = vmatprep.subr.mxu0 0.0
        %1257 = vmatpush1.xpose.msra.mxu0 0.0
        %1258 = vmatprep.subr.mxu0 0.0
        %1259 = vmatpush1.xpose.msra.mxu0 0.0
        %1260 = vmatprep.subr.mxu0 0.0
        %1261 = vmatpush1.xpose.msra.mxu0 0.0
        %1262 = vmatprep.subr.mxu0 0.0
        %1263 = vmatpush1.xpose.msra.mxu0 0.0
        %1264 = vmatprep.subr.mxu0 0.0
        %1265 = vmatpush1.xpose.msra.mxu0 0.0
        %1266 = vmatprep.subr.mxu0 0.0
        %1267 = vmatpush1.xpose.msra.mxu0 0.0
        %1268 = vmatprep.subr.mxu0 0.0
        %1269 = vmatpush1.xpose.msra.mxu0 0.0
        %1270 = vmatprep.subr.mxu0 0.0
        %1271 = vmatpush1.xpose.msra.mxu0 0.0
        %1272 = vmatprep.mubr.f32.mxu0 0.0
        %1273 = vmatmul.mubr.f32.gmra.mrb[0].mxu0 %v546
        %v1274 = vpop.f32.mrb[0].mxu0
        %v1275 = vadd.f32 0.0, %v1274
        %v1276 = vpop.f32.mrb[0].mxu0
        %1277 = vmatprep.mubr.f32.mxu0 0.0
        %1278 = vmatmul.mubr.f32.gmra.mrb[0].mxu0 %v547
        %v1279 = vpop.f32.mrb[0].mxu0
        %v1280 = vadd.f32 0.0, %v1279
        %v1281 = vpop.f32.mrb[0].mxu0
        %1282 = vdwg.mxu0
        %1283 = vmatprep.subr.mxu0 0.0
        %1284 = vmatpush1.xpose.msra.mxu0 %v376
        %1285 = vmatprep.subr.mxu0 0.0
        %1286 = vmatpush1.xpose.msra.mxu0 %v377
        %1287 = vmatprep.subr.mxu0 0.0
        %1288 = vmatpush1.xpose.msra.mxu0 0.0
        %1289 = vmatprep.subr.mxu0 0.0
        %1290 = vmatpush1.xpose.msra.mxu0 0.0
        %1291 = vmatprep.subr.mxu0 0.0
        %1292 = vmatpush1.xpose.msra.mxu0 0.0
        %1293 = vmatprep.subr.mxu0 0.0
        %1294 = vmatpush1.xpose.msra.mxu0 0.0
        %1295 = vmatprep.subr.mxu0 0.0
        %1296 = vmatpush1.xpose.msra.mxu0 0.0
        %1297 = vmatprep.subr.mxu0 0.0
        %1298 = vmatpush1.xpose.msra.mxu0 0.0
        %1299 = vmatprep.subr.mxu0 0.0
        %1300 = vmatpush1.xpose.msra.mxu0 0.0
        %1301 = vmatprep.subr.mxu0 0.0
        %1302 = vmatpush1.xpose.msra.mxu0 0.0
        %1303 = vmatprep.subr.mxu0 0.0
        %1304 = vmatpush1.xpose.msra.mxu0 0.0
        %1305 = vmatprep.subr.mxu0 0.0
        %1306 = vmatpush1.xpose.msra.mxu0 0.0
        %1307 = vmatprep.subr.mxu0 0.0
        %1308 = vmatpush1.xpose.msra.mxu0 0.0
        %1309 = vmatprep.subr.mxu0 0.0
        %1310 = vmatpush1.xpose.msra.mxu0 0.0
        %1311 = vmatprep.subr.mxu0 0.0
        %1312 = vmatpush1.xpose.msra.mxu0 0.0
        %1313 = vmatprep.subr.mxu0 0.0
        %1314 = vmatpush1.xpose.msra.mxu0 0.0
        %1315 = vmatprep.subr.mxu0 0.0
        %1316 = vmatpush1.xpose.msra.mxu0 0.0
        %1317 = vmatprep.subr.mxu0 0.0
        %1318 = vmatpush1.xpose.msra.mxu0 0.0
        %1319 = vmatprep.subr.mxu0 0.0
        %1320 = vmatpush1.xpose.msra.mxu0 0.0
        %1321 = vmatprep.subr.mxu0 0.0
        %1322 = vmatpush1.xpose.msra.mxu0 0.0
        %1323 = vmatprep.subr.mxu0 0.0
        %1324 = vmatpush1.xpose.msra.mxu0 0.0
        %1325 = vmatprep.subr.mxu0 0.0
        %1326 = vmatpush1.xpose.msra.mxu0 0.0
        %1327 = vmatprep.subr.mxu0 0.0
        %1328 = vmatpush1.xpose.msra.mxu0 0.0
        %1329 = vmatprep.subr.mxu0 0.0
        %1330 = vmatpush1.xpose.msra.mxu0 0.0
        %1331 = vmatprep.subr.mxu0 0.0
        %1332 = vmatpush1.xpose.msra.mxu0 0.0
        %1333 = vmatprep.subr.mxu0 0.0
        %1334 = vmatpush1.xpose.msra.mxu0 0.0
        %1335 = vmatprep.subr.mxu0 0.0
        %1336 = vmatpush1.xpose.msra.mxu0 0.0
        %1337 = vmatprep.subr.mxu0 0.0
        %1338 = vmatpush1.xpose.msra.mxu0 0.0
        %1339 = vmatprep.subr.mxu0 0.0
        %1340 = vmatpush1.xpose.msra.mxu0 0.0
        %1341 = vmatprep.subr.mxu0 0.0
        %1342 = vmatpush1.xpose.msra.mxu0 0.0
        %1343 = vmatprep.subr.mxu0 0.0
        %1344 = vmatpush1.xpose.msra.mxu0 0.0
        %1345 = vmatprep.subr.mxu0 0.0
        %1346 = vmatpush1.xpose.msra.mxu0 0.0
        %1347 = vmatprep.mubr.f32.mxu0 0.0
        %1348 = vmatmul.mubr.f32.gmra.mrb[0].mxu0 %v667
        %v1349 = vpop.f32.mrb[0].mxu0
        %v1350 = vadd.f32 0.0, %v1349
        %v1351 = vpop.f32.mrb[0].mxu0
        %1352 = vmatprep.mubr.f32.mxu0 0.0
        %1353 = vmatmul.mubr.f32.gmra.mrb[0].mxu0 %v668
        %v1354 = vpop.f32.mrb[0].mxu0
        %v1355 = vadd.f32 0.0, %v1354
        %v1356 = vpop.f32.mrb[0].mxu0
        %1357 = vdwg.mxu0
        %1358 = vmatprep.subr.mxu0 0.0
        %1359 = vmatpush1.xpose.msra.mxu0 %v378
        %1360 = vmatprep.subr.mxu0 0.0
        %1361 = vmatpush1.xpose.msra.mxu0 %v379
        %1362 = vmatprep.subr.mxu0 0.0
        %1363 = vmatpush1.xpose.msra.mxu0 0.0
        %1364 = vmatprep.subr.mxu0 0.0
        %1365 = vmatpush1.xpose.msra.mxu0 0.0
        %1366 = vmatprep.subr.mxu0 0.0
        %1367 = vmatpush1.xpose.msra.mxu0 0.0
        %1368 = vmatprep.subr.mxu0 0.0
        %1369 = vmatpush1.xpose.msra.mxu0 0.0
        %1370 = vmatprep.subr.mxu0 0.0
        %1371 = vmatpush1.xpose.msra.mxu0 0.0
        %1372 = vmatprep.subr.mxu0 0.0
        %1373 = vmatpush1.xpose.msra.mxu0 0.0
        %1374 = vmatprep.subr.mxu0 0.0
        %1375 = vmatpush1.xpose.msra.mxu0 0.0
        %1376 = vmatprep.subr.mxu0 0.0
        %1377 = vmatpush1.xpose.msra.mxu0 0.0
        %1378 = vmatprep.subr.mxu0 0.0
        %1379 = vmatpush1.xpose.msra.mxu0 0.0
        %1380 = vmatprep.subr.mxu0 0.0
        %1381 = vmatpush1.xpose.msra.mxu0 0.0
        %1382 = vmatprep.subr.mxu0 0.0
        %1383 = vmatpush1.xpose.msra.mxu0 0.0
        %1384 = vmatprep.subr.mxu0 0.0
        %1385 = vmatpush1.xpose.msra.mxu0 0.0
        %1386 = vmatprep.subr.mxu0 0.0
        %1387 = vmatpush1.xpose.msra.mxu0 0.0
        %1388 = vmatprep.subr.mxu0 0.0
        %1389 = vmatpush1.xpose.msra.mxu0 0.0
        %1390 = vmatprep.subr.mxu0 0.0
        %1391 = vmatpush1.xpose.msra.mxu0 0.0
        %1392 = vmatprep.subr.mxu0 0.0
        %1393 = vmatpush1.xpose.msra.mxu0 0.0
        %1394 = vmatprep.subr.mxu0 0.0
        %1395 = vmatpush1.xpose.msra.mxu0 0.0
        %1396 = vmatprep.subr.mxu0 0.0
        %1397 = vmatpush1.xpose.msra.mxu0 0.0
        %1398 = vmatprep.subr.mxu0 0.0
        %1399 = vmatpush1.xpose.msra.mxu0 0.0
        %1400 = vmatprep.subr.mxu0 0.0
        %1401 = vmatpush1.xpose.msra.mxu0 0.0
        %1402 = vmatprep.subr.mxu0 0.0
        %1403 = vmatpush1.xpose.msra.mxu0 0.0
        %1404 = vmatprep.subr.mxu0 0.0
        %1405 = vmatpush1.xpose.msra.mxu0 0.0
        %1406 = vmatprep.subr.mxu0 0.0
        %1407 = vmatpush1.xpose.msra.mxu0 0.0
        %1408 = vmatprep.subr.mxu0 0.0
        %1409 = vmatpush1.xpose.msra.mxu0 0.0
        %1410 = vmatprep.subr.mxu0 0.0
        %1411 = vmatpush1.xpose.msra.mxu0 0.0
        %1412 = vmatprep.subr.mxu0 0.0
        %1413 = vmatpush1.xpose.msra.mxu0 0.0
        %1414 = vmatprep.subr.mxu0 0.0
        %1415 = vmatpush1.xpose.msra.mxu0 0.0
        %1416 = vmatprep.subr.mxu0 0.0
        %1417 = vmatpush1.xpose.msra.mxu0 0.0
        %1418 = vmatprep.subr.mxu0 0.0
        %1419 = vmatpush1.xpose.msra.mxu0 0.0
        %1420 = vmatprep.subr.mxu0 0.0
        %1421 = vmatpush1.xpose.msra.mxu0 0.0
        %1422 = vmatprep.mubr.f32.mxu0 0.0
        %1423 = vmatmul.mubr.f32.gmra.mrb[0].mxu0 %v669
        %v1424 = vpop.f32.mrb[0].mxu0
        %v1425 = vadd.f32 0.0, %v1424
        %v1426 = vpop.f32.mrb[0].mxu0
        %1427 = vmatprep.mubr.f32.mxu0 0.0
        %1428 = vmatmul.mubr.f32.gmra.mrb[0].mxu0 %v670
        %v1429 = vpop.f32.mrb[0].mxu0
        %v1430 = vadd.f32 0.0, %v1429
        %v1431 = vpop.f32.mrb[0].mxu0
        %1432 = vdwg.mxu0
        %1433 = vmatprep.subr.mxu0 0.0
        %1434 = vmatpush1.xpose.msra.mxu0 %v380
        %1435 = vmatprep.subr.mxu0 0.0
        %1436 = vmatpush1.xpose.msra.mxu0 %v381
        %1437 = vmatprep.subr.mxu0 0.0
        %1438 = vmatpush1.xpose.msra.mxu0 0.0
        %1439 = vmatprep.subr.mxu0 0.0
        %1440 = vmatpush1.xpose.msra.mxu0 0.0
        %1441 = vmatprep.subr.mxu0 0.0
        %1442 = vmatpush1.xpose.msra.mxu0 0.0
        %1443 = vmatprep.subr.mxu0 0.0
        %1444 = vmatpush1.xpose.msra.mxu0 0.0
        %1445 = vmatprep.subr.mxu0 0.0
        %1446 = vmatpush1.xpose.msra.mxu0 0.0
        %1447 = vmatprep.subr.mxu0 0.0
        %1448 = vmatpush1.xpose.msra.mxu0 0.0
        %1449 = vmatprep.subr.mxu0 0.0
        %1450 = vmatpush1.xpose.msra.mxu0 0.0
        %1451 = vmatprep.subr.mxu0 0.0
        %1452 = vmatpush1.xpose.msra.mxu0 0.0
        %1453 = vmatprep.subr.mxu0 0.0
        %1454 = vmatpush1.xpose.msra.mxu0 0.0
        %1455 = vmatprep.subr.mxu0 0.0
        %1456 = vmatpush1.xpose.msra.mxu0 0.0
        %1457 = vmatprep.subr.mxu0 0.0
        %1458 = vmatpush1.xpose.msra.mxu0 0.0
        %1459 = vmatprep.subr.mxu0 0.0
        %1460 = vmatpush1.xpose.msra.mxu0 0.0
        %1461 = vmatprep.subr.mxu0 0.0
        %1462 = vmatpush1.xpose.msra.mxu0 0.0
        %1463 = vmatprep.subr.mxu0 0.0
        %1464 = vmatpush1.xpose.msra.mxu0 0.0
        %1465 = vmatprep.subr.mxu0 0.0
        %1466 = vmatpush1.xpose.msra.mxu0 0.0
        %1467 = vmatprep.subr.mxu0 0.0
        %1468 = vmatpush1.xpose.msra.mxu0 0.0
        %1469 = vmatprep.subr.mxu0 0.0
        %1470 = vmatpush1.xpose.msra.mxu0 0.0
        %1471 = vmatprep.subr.mxu0 0.0
        %1472 = vmatpush1.xpose.msra.mxu0 0.0
        %1473 = vmatprep.subr.mxu0 0.0
        %1474 = vmatpush1.xpose.msra.mxu0 0.0
        %1475 = vmatprep.subr.mxu0 0.0
        %1476 = vmatpush1.xpose.msra.mxu0 0.0
        %1477 = vmatprep.subr.mxu0 0.0
        %1478 = vmatpush1.xpose.msra.mxu0 0.0
        %1479 = vmatprep.subr.mxu0 0.0
        %1480 = vmatpush1.xpose.msra.mxu0 0.0
        %1481 = vmatprep.subr.mxu0 0.0
        %1482 = vmatpush1.xpose.msra.mxu0 0.0
        %1483 = vmatprep.subr.mxu0 0.0
        %1484 = vmatpush1.xpose.msra.mxu0 0.0
        %1485 = vmatprep.subr.mxu0 0.0
        %1486 = vmatpush1.xpose.msra.mxu0 0.0
        %1487 = vmatprep.subr.mxu0 0.0
        %1488 = vmatpush1.xpose.msra.mxu0 0.0
        %1489 = vmatprep.subr.mxu0 0.0
        %1490 = vmatpush1.xpose.msra.mxu0 0.0
        %1491 = vmatprep.subr.mxu0 0.0
        %1492 = vmatpush1.xpose.msra.mxu0 0.0
        %1493 = vmatprep.subr.mxu0 0.0
        %1494 = vmatpush1.xpose.msra.mxu0 0.0
        %1495 = vmatprep.subr.mxu0 0.0
        %1496 = vmatpush1.xpose.msra.mxu0 0.0
        %1497 = vmatprep.mubr.f32.mxu0 0.0
        %1498 = vmatmul.mubr.f32.gmra.mrb[0].mxu0 %v671
        %v1499 = vpop.f32.mrb[0].mxu0
        %v1500 = vadd.f32 0.0, %v1499
        %v1501 = vpop.f32.mrb[0].mxu0
        %1502 = vmatprep.mubr.f32.mxu0 0.0
        %1503 = vmatmul.mubr.f32.gmra.mrb[0].mxu0 %v672
        %v1504 = vpop.f32.mrb[0].mxu0
        %v1505 = vadd.f32 0.0, %v1504
        %v1506 = vpop.f32.mrb[0].mxu0
        %1507 = vdwg.mxu0
        %1508 = vmatprep.subr.mxu0 0.0
        %1509 = vmatpush1.xpose.msra.mxu0 %v382
        %1510 = vmatprep.subr.mxu0 0.0
        %1511 = vmatpush1.xpose.msra.mxu0 %v383
        %1512 = vmatprep.subr.mxu0 0.0
        %1513 = vmatpush1.xpose.msra.mxu0 0.0
        %1514 = vmatprep.subr.mxu0 0.0
        %1515 = vmatpush1.xpose.msra.mxu0 0.0
        %1516 = vmatprep.subr.mxu0 0.0
        %1517 = vmatpush1.xpose.msra.mxu0 0.0
        %1518 = vmatprep.subr.mxu0 0.0
        %1519 = vmatpush1.xpose.msra.mxu0 0.0
        %1520 = vmatprep.subr.mxu0 0.0
        %1521 = vmatpush1.xpose.msra.mxu0 0.0
        %1522 = vmatprep.subr.mxu0 0.0
        %1523 = vmatpush1.xpose.msra.mxu0 0.0
        %1524 = vmatprep.subr.mxu0 0.0
        %1525 = vmatpush1.xpose.msra.mxu0 0.0
        %1526 = vmatprep.subr.mxu0 0.0
        %1527 = vmatpush1.xpose.msra.mxu0 0.0
        %1528 = vmatprep.subr.mxu0 0.0
        %1529 = vmatpush1.xpose.msra.mxu0 0.0
        %1530 = vmatprep.subr.mxu0 0.0
        %1531 = vmatpush1.xpose.msra.mxu0 0.0
        %1532 = vmatprep.subr.mxu0 0.0
        %1533 = vmatpush1.xpose.msra.mxu0 0.0
        %1534 = vmatprep.subr.mxu0 0.0
        %1535 = vmatpush1.xpose.msra.mxu0 0.0
        %1536 = vmatprep.subr.mxu0 0.0
        %1537 = vmatpush1.xpose.msra.mxu0 0.0
        %1538 = vmatprep.subr.mxu0 0.0
        %1539 = vmatpush1.xpose.msra.mxu0 0.0
        %1540 = vmatprep.subr.mxu0 0.0
        %1541 = vmatpush1.xpose.msra.mxu0 0.0
        %1542 = vmatprep.subr.mxu0 0.0
        %1543 = vmatpush1.xpose.msra.mxu0 0.0
        %1544 = vmatprep.subr.mxu0 0.0
        %1545 = vmatpush1.xpose.msra.mxu0 0.0
        %1546 = vmatprep.subr.mxu0 0.0
        %1547 = vmatpush1.xpose.msra.mxu0 0.0
        %1548 = vmatprep.subr.mxu0 0.0
        %1549 = vmatpush1.xpose.msra.mxu0 0.0
        %1550 = vmatprep.subr.mxu0 0.0
        %1551 = vmatpush1.xpose.msra.mxu0 0.0
        %1552 = vmatprep.subr.mxu0 0.0
        %1553 = vmatpush1.xpose.msra.mxu0 0.0
        %1554 = vmatprep.subr.mxu0 0.0
        %1555 = vmatpush1.xpose.msra.mxu0 0.0
        %1556 = vmatprep.subr.mxu0 0.0
        %1557 = vmatpush1.xpose.msra.mxu0 0.0
        %1558 = vmatprep.subr.mxu0 0.0
        %1559 = vmatpush1.xpose.msra.mxu0 0.0
        %1560 = vmatprep.subr.mxu0 0.0
        %1561 = vmatpush1.xpose.msra.mxu0 0.0
        %1562 = vmatprep.subr.mxu0 0.0
        %1563 = vmatpush1.xpose.msra.mxu0 0.0
        %1564 = vmatprep.subr.mxu0 0.0
        %1565 = vmatpush1.xpose.msra.mxu0 0.0
        %1566 = vmatprep.subr.mxu0 0.0
        %1567 = vmatpush1.xpose.msra.mxu0 0.0
        %1568 = vmatprep.subr.mxu0 0.0
        %1569 = vmatpush1.xpose.msra.mxu0 0.0
        %1570 = vmatprep.subr.mxu0 0.0
        %1571 = vmatpush1.xpose.msra.mxu0 0.0
        %1572 = vmatprep.mubr.f32.mxu0 0.0
        %1573 = vmatmul.mubr.f32.gmra.mrb[0].mxu0 %v673
        %v1574 = vpop.f32.mrb[0].mxu0
        %v1575 = vadd.f32 0.0, %v1574
        %v1576 = vpop.f32.mrb[0].mxu0
        %1577 = vmatprep.mubr.f32.mxu0 0.0
        %1578 = vmatmul.mubr.f32.gmra.mrb[0].mxu0 %v674
        %v1579 = vpop.f32.mrb[0].mxu0
        %v1580 = vadd.f32 0.0, %v1579
        %v1581 = vpop.f32.mrb[0].mxu0
        %1582 = vdwg.mxu0
        %1583 = vmatprep.subr.mxu0 0.0
        %1584 = vmatpush1.xpose.msra.mxu0 %v384
        %1585 = vmatprep.subr.mxu0 0.0
        %1586 = vmatpush1.xpose.msra.mxu0 %v385
        %1587 = vmatprep.subr.mxu0 0.0
        %1588 = vmatpush1.xpose.msra.mxu0 0.0
        %1589 = vmatprep.subr.mxu0 0.0
        %1590 = vmatpush1.xpose.msra.mxu0 0.0
        %1591 = vmatprep.subr.mxu0 0.0
        %1592 = vmatpush1.xpose.msra.mxu0 0.0
        %1593 = vmatprep.subr.mxu0 0.0
        %1594 = vmatpush1.xpose.msra.mxu0 0.0
        %1595 = vmatprep.subr.mxu0 0.0
        %1596 = vmatpush1.xpose.msra.mxu0 0.0
        %1597 = vmatprep.subr.mxu0 0.0
        %1598 = vmatpush1.xpose.msra.mxu0 0.0
        %1599 = vmatprep.subr.mxu0 0.0
        %1600 = vmatpush1.xpose.msra.mxu0 0.0
        %1601 = vmatprep.subr.mxu0 0.0
        %1602 = vmatpush1.xpose.msra.mxu0 0.0
        %1603 = vmatprep.subr.mxu0 0.0
        %1604 = vmatpush1.xpose.msra.mxu0 0.0
        %1605 = vmatprep.subr.mxu0 0.0
        %1606 = vmatpush1.xpose.msra.mxu0 0.0
        %1607 = vmatprep.subr.mxu0 0.0
        %1608 = vmatpush1.xpose.msra.mxu0 0.0
        %1609 = vmatprep.subr.mxu0 0.0
        %1610 = vmatpush1.xpose.msra.mxu0 0.0
        %1611 = vmatprep.subr.mxu0 0.0
        %1612 = vmatpush1.xpose.msra.mxu0 0.0
        %1613 = vmatprep.subr.mxu0 0.0
        %1614 = vmatpush1.xpose.msra.mxu0 0.0
        %1615 = vmatprep.subr.mxu0 0.0
        %1616 = vmatpush1.xpose.msra.mxu0 0.0
        %1617 = vmatprep.subr.mxu0 0.0
        %1618 = vmatpush1.xpose.msra.mxu0 0.0
        %1619 = vmatprep.subr.mxu0 0.0
        %1620 = vmatpush1.xpose.msra.mxu0 0.0
        %1621 = vmatprep.subr.mxu0 0.0
        %1622 = vmatpush1.xpose.msra.mxu0 0.0
        %1623 = vmatprep.subr.mxu0 0.0
        %1624 = vmatpush1.xpose.msra.mxu0 0.0
        %1625 = vmatprep.subr.mxu0 0.0
        %1626 = vmatpush1.xpose.msra.mxu0 0.0
        %1627 = vmatprep.subr.mxu0 0.0
        %1628 = vmatpush1.xpose.msra.mxu0 0.0
        %1629 = vmatprep.subr.mxu0 0.0
        %1630 = vmatpush1.xpose.msra.mxu0 0.0
        %1631 = vmatprep.subr.mxu0 0.0
        %1632 = vmatpush1.xpose.msra.mxu0 0.0
        %1633 = vmatprep.subr.mxu0 0.0
        %1634 = vmatpush1.xpose.msra.mxu0 0.0
        %1635 = vmatprep.subr.mxu0 0.0
        %1636 = vmatpush1.xpose.msra.mxu0 0.0
        %1637 = vmatprep.subr.mxu0 0.0
        %1638 = vmatpush1.xpose.msra.mxu0 0.0
        %1639 = vmatprep.subr.mxu0 0.0
        %1640 = vmatpush1.xpose.msra.mxu0 0.0
        %1641 = vmatprep.subr.mxu0 0.0
        %1642 = vmatpush1.xpose.msra.mxu0 0.0
        %1643 = vmatprep.subr.mxu0 0.0
        %1644 = vmatpush1.xpose.msra.mxu0 0.0
        %1645 = vmatprep.subr.mxu0 0.0
        %1646 = vmatpush1.xpose.msra.mxu0 0.0
        %1647 = vmatprep.mubr.f32.mxu0 0.0
        %1648 = vmatmul.mubr.f32.gmra.mrb[0].mxu0 %v675
        %v1649 = vpop.f32.mrb[0].mxu0
        %v1650 = vadd.f32 0.0, %v1649
        %v1651 = vpop.f32.mrb[0].mxu0
        %1652 = vmatprep.mubr.f32.mxu0 0.0
        %1653 = vmatmul.mubr.f32.gmra.mrb[0].mxu0 %v676
        %v1654 = vpop.f32.mrb[0].mxu0
        %v1655 = vadd.f32 0.0, %v1654
        %v1656 = vpop.f32.mrb[0].mxu0
        %1657 = vdwg.mxu0
        %1658 = vmatprep.subr.mxu0 0.0
        %1659 = vmatpush1.xpose.msra.mxu0 %v386
        %1660 = vmatprep.subr.mxu0 0.0
        %1661 = vmatpush1.xpose.msra.mxu0 %v387
        %1662 = vmatprep.subr.mxu0 0.0
        %1663 = vmatpush1.xpose.msra.mxu0 0.0
        %1664 = vmatprep.subr.mxu0 0.0
        %1665 = vmatpush1.xpose.msra.mxu0 0.0
        %1666 = vmatprep.subr.mxu0 0.0
        %1667 = vmatpush1.xpose.msra.mxu0 0.0
        %1668 = vmatprep.subr.mxu0 0.0
        %1669 = vmatpush1.xpose.msra.mxu0 0.0
        %1670 = vmatprep.subr.mxu0 0.0
        %1671 = vmatpush1.xpose.msra.mxu0 0.0
        %1672 = vmatprep.subr.mxu0 0.0
        %1673 = vmatpush1.xpose.msra.mxu0 0.0
        %1674 = vmatprep.subr.mxu0 0.0
        %1675 = vmatpush1.xpose.msra.mxu0 0.0
        %1676 = vmatprep.subr.mxu0 0.0
        %1677 = vmatpush1.xpose.msra.mxu0 0.0
        %1678 = vmatprep.subr.mxu0 0.0
        %1679 = vmatpush1.xpose.msra.mxu0 0.0
        %1680 = vmatprep.subr.mxu0 0.0
        %1681 = vmatpush1.xpose.msra.mxu0 0.0
        %1682 = vmatprep.subr.mxu0 0.0
        %1683 = vmatpush1.xpose.msra.mxu0 0.0
        %1684 = vmatprep.subr.mxu0 0.0
        %1685 = vmatpush1.xpose.msra.mxu0 0.0
        %1686 = vmatprep.subr.mxu0 0.0
        %1687 = vmatpush1.xpose.msra.mxu0 0.0
        %1688 = vmatprep.subr.mxu0 0.0
        %1689 = vmatpush1.xpose.msra.mxu0 0.0
        %1690 = vmatprep.subr.mxu0 0.0
        %1691 = vmatpush1.xpose.msra.mxu0 0.0
        %1692 = vmatprep.subr.mxu0 0.0
        %1693 = vmatpush1.xpose.msra.mxu0 0.0
        %1694 = vmatprep.subr.mxu0 0.0
        %1695 = vmatpush1.xpose.msra.mxu0 0.0
        %1696 = vmatprep.subr.mxu0 0.0
        %1697 = vmatpush1.xpose.msra.mxu0 0.0
        %1698 = vmatprep.subr.mxu0 0.0
        %1699 = vmatpush1.xpose.msra.mxu0 0.0
        %1700 = vmatprep.subr.mxu0 0.0
        %1701 = vmatpush1.xpose.msra.mxu0 0.0
        %1702 = vmatprep.subr.mxu0 0.0
        %1703 = vmatpush1.xpose.msra.mxu0 0.0
        %1704 = vmatprep.subr.mxu0 0.0
        %1705 = vmatpush1.xpose.msra.mxu0 0.0
        %1706 = vmatprep.subr.mxu0 0.0
        %1707 = vmatpush1.xpose.msra.mxu0 0.0
        %1708 = vmatprep.subr.mxu0 0.0
        %1709 = vmatpush1.xpose.msra.mxu0 0.0
        %1710 = vmatprep.subr.mxu0 0.0
        %1711 = vmatpush1.xpose.msra.mxu0 0.0
        %1712 = vmatprep.subr.mxu0 0.0
        %1713 = vmatpush1.xpose.msra.mxu0 0.0
        %1714 = vmatprep.subr.mxu0 0.0
        %1715 = vmatpush1.xpose.msra.mxu0 0.0
        %1716 = vmatprep.subr.mxu0 0.0
        %1717 = vmatpush1.xpose.msra.mxu0 0.0
        %1718 = vmatprep.subr.mxu0 0.0
        %1719 = vmatpush1.xpose.msra.mxu0 0.0
        %1720 = vmatprep.subr.mxu0 0.0
        %1721 = vmatpush1.xpose.msra.mxu0 0.0
        %1722 = vmatprep.mubr.f32.mxu0 0.0
        %1723 = vmatmul.mubr.f32.gmra.mrb[0].mxu0 %v677
        %v1724 = vpop.f32.mrb[0].mxu0
        %v1725 = vadd.f32 0.0, %v1724
        %v1726 = vpop.f32.mrb[0].mxu0
        %1727 = vmatprep.mubr.f32.mxu0 0.0
        %1728 = vmatmul.mubr.f32.gmra.mrb[0].mxu0 %v678
        %v1729 = vpop.f32.mrb[0].mxu0
        %v1730 = vadd.f32 0.0, %v1729
        %v1731 = vpop.f32.mrb[0].mxu0
        %1732 = vdwg.mxu0
        %1733 = vmatprep.subr.mxu0 0.0
        %1734 = vmatpush1.xpose.msra.mxu0 %v388
        %1735 = vmatprep.subr.mxu0 0.0
        %1736 = vmatpush1.xpose.msra.mxu0 %v389
        %1737 = vmatprep.subr.mxu0 0.0
        %1738 = vmatpush1.xpose.msra.mxu0 0.0
        %1739 = vmatprep.subr.mxu0 0.0
        %1740 = vmatpush1.xpose.msra.mxu0 0.0
        %1741 = vmatprep.subr.mxu0 0.0
        %1742 = vmatpush1.xpose.msra.mxu0 0.0
        %1743 = vmatprep.subr.mxu0 0.0
        %1744 = vmatpush1.xpose.msra.mxu0 0.0
        %1745 = vmatprep.subr.mxu0 0.0
        %1746 = vmatpush1.xpose.msra.mxu0 0.0
        %1747 = vmatprep.subr.mxu0 0.0
        %1748 = vmatpush1.xpose.msra.mxu0 0.0
        %1749 = vmatprep.subr.mxu0 0.0
        %1750 = vmatpush1.xpose.msra.mxu0 0.0
        %1751 = vmatprep.subr.mxu0 0.0
        %1752 = vmatpush1.xpose.msra.mxu0 0.0
        %1753 = vmatprep.subr.mxu0 0.0
        %1754 = vmatpush1.xpose.msra.mxu0 0.0
        %1755 = vmatprep.subr.mxu0 0.0
        %1756 = vmatpush1.xpose.msra.mxu0 0.0
        %1757 = vmatprep.subr.mxu0 0.0
        %1758 = vmatpush1.xpose.msra.mxu0 0.0
        %1759 = vmatprep.subr.mxu0 0.0
        %1760 = vmatpush1.xpose.msra.mxu0 0.0
        %1761 = vmatprep.subr.mxu0 0.0
        %1762 = vmatpush1.xpose.msra.mxu0 0.0
        %1763 = vmatprep.subr.mxu0 0.0
        %1764 = vmatpush1.xpose.msra.mxu0 0.0
        %1765 = vmatprep.subr.mxu0 0.0
        %1766 = vmatpush1.xpose.msra.mxu0 0.0
        %1767 = vmatprep.subr.mxu0 0.0
        %1768 = vmatpush1.xpose.msra.mxu0 0.0
        %1769 = vmatprep.subr.mxu0 0.0
        %1770 = vmatpush1.xpose.msra.mxu0 0.0
        %1771 = vmatprep.subr.mxu0 0.0
        %1772 = vmatpush1.xpose.msra.mxu0 0.0
        %1773 = vmatprep.subr.mxu0 0.0
        %1774 = vmatpush1.xpose.msra.mxu0 0.0
        %1775 = vmatprep.subr.mxu0 0.0
        %1776 = vmatpush1.xpose.msra.mxu0 0.0
        %1777 = vmatprep.subr.mxu0 0.0
        %1778 = vmatpush1.xpose.msra.mxu0 0.0
        %1779 = vmatprep.subr.mxu0 0.0
        %1780 = vmatpush1.xpose.msra.mxu0 0.0
        %1781 = vmatprep.subr.mxu0 0.0
        %1782 = vmatpush1.xpose.msra.mxu0 0.0
        %1783 = vmatprep.subr.mxu0 0.0
        %1784 = vmatpush1.xpose.msra.mxu0 0.0
        %1785 = vmatprep.subr.mxu0 0.0
        %1786 = vmatpush1.xpose.msra.mxu0 0.0
        %1787 = vmatprep.subr.mxu0 0.0
        %1788 = vmatpush1.xpose.msra.mxu0 0.0
        %1789 = vmatprep.subr.mxu0 0.0
        %1790 = vmatpush1.xpose.msra.mxu0 0.0
        %1791 = vmatprep.subr.mxu0 0.0
        %1792 = vmatpush1.xpose.msra.mxu0 0.0
        %1793 = vmatprep.subr.mxu0 0.0
        %1794 = vmatpush1.xpose.msra.mxu0 0.0
        %1795 = vmatprep.subr.mxu0 0.0
        %1796 = vmatpush1.xpose.msra.mxu0 0.0
        %1797 = vmatprep.mubr.f32.mxu0 0.0
        %1798 = vmatmul.mubr.f32.gmra.mrb[0].mxu0 %v679
        %v1799 = vpop.f32.mrb[0].mxu0
        %v1800 = vadd.f32 0.0, %v1799
        %v1801 = vpop.f32.mrb[0].mxu0
        %1802 = vmatprep.mubr.f32.mxu0 0.0
        %1803 = vmatmul.mubr.f32.gmra.mrb[0].mxu0 %v680
        %v1804 = vpop.f32.mrb[0].mxu0
        %v1805 = vadd.f32 0.0, %v1804
        %v1806 = vpop.f32.mrb[0].mxu0
        %1807 = vdwg.mxu0
        %1808 = vmatprep.subr.mxu0 0.0
        %1809 = vmatpush1.xpose.msra.mxu0 %v390
        %1810 = vmatprep.subr.mxu0 0.0
        %1811 = vmatpush1.xpose.msra.mxu0 %v391
        %1812 = vmatprep.subr.mxu0 0.0
        %1813 = vmatpush1.xpose.msra.mxu0 0.0
        %1814 = vmatprep.subr.mxu0 0.0
        %1815 = vmatpush1.xpose.msra.mxu0 0.0
        %1816 = vmatprep.subr.mxu0 0.0
        %1817 = vmatpush1.xpose.msra.mxu0 0.0
        %1818 = vmatprep.subr.mxu0 0.0
        %1819 = vmatpush1.xpose.msra.mxu0 0.0
        %1820 = vmatprep.subr.mxu0 0.0
        %1821 = vmatpush1.xpose.msra.mxu0 0.0
        %1822 = vmatprep.subr.mxu0 0.0
        %1823 = vmatpush1.xpose.msra.mxu0 0.0
        %1824 = vmatprep.subr.mxu0 0.0
        %1825 = vmatpush1.xpose.msra.mxu0 0.0
        %1826 = vmatprep.subr.mxu0 0.0
        %1827 = vmatpush1.xpose.msra.mxu0 0.0
        %1828 = vmatprep.subr.mxu0 0.0
        %1829 = vmatpush1.xpose.msra.mxu0 0.0
        %1830 = vmatprep.subr.mxu0 0.0
        %1831 = vmatpush1.xpose.msra.mxu0 0.0
        %1832 = vmatprep.subr.mxu0 0.0
        %1833 = vmatpush1.xpose.msra.mxu0 0.0
        %1834 = vmatprep.subr.mxu0 0.0
        %1835 = vmatpush1.xpose.msra.mxu0 0.0
        %1836 = vmatprep.subr.mxu0 0.0
        %1837 = vmatpush1.xpose.msra.mxu0 0.0
        %1838 = vmatprep.subr.mxu0 0.0
        %1839 = vmatpush1.xpose.msra.mxu0 0.0
        %1840 = vmatprep.subr.mxu0 0.0
        %1841 = vmatpush1.xpose.msra.mxu0 0.0
        %1842 = vmatprep.subr.mxu0 0.0
        %1843 = vmatpush1.xpose.msra.mxu0 0.0
        %1844 = vmatprep.subr.mxu0 0.0
        %1845 = vmatpush1.xpose.msra.mxu0 0.0
        %1846 = vmatprep.subr.mxu0 0.0
        %1847 = vmatpush1.xpose.msra.mxu0 0.0
        %1848 = vmatprep.subr.mxu0 0.0
        %1849 = vmatpush1.xpose.msra.mxu0 0.0
        %1850 = vmatprep.subr.mxu0 0.0
        %1851 = vmatpush1.xpose.msra.mxu0 0.0
        %1852 = vmatprep.subr.mxu0 0.0
        %1853 = vmatpush1.xpose.msra.mxu0 0.0
        %1854 = vmatprep.subr.mxu0 0.0
        %1855 = vmatpush1.xpose.msra.mxu0 0.0
        %1856 = vmatprep.subr.mxu0 0.0
        %1857 = vmatpush1.xpose.msra.mxu0 0.0
        %1858 = vmatprep.subr.mxu0 0.0
        %1859 = vmatpush1.xpose.msra.mxu0 0.0
        %1860 = vmatprep.subr.mxu0 0.0
        %1861 = vmatpush1.xpose.msra.mxu0 0.0
        %1862 = vmatprep.subr.mxu0 0.0
        %1863 = vmatpush1.xpose.msra.mxu0 0.0
        %1864 = vmatprep.subr.mxu0 0.0
        %1865 = vmatpush1.xpose.msra.mxu0 0.0
        %1866 = vmatprep.subr.mxu0 0.0
        %1867 = vmatpush1.xpose.msra.mxu0 0.0
        %1868 = vmatprep.subr.mxu0 0.0
        %1869 = vmatpush1.xpose.msra.mxu0 0.0
        %1870 = vmatprep.subr.mxu0 0.0
        %1871 = vmatpush1.xpose.msra.mxu0 0.0
        %1872 = vmatprep.mubr.f32.mxu0 0.0
        %1873 = vmatmul.mubr.f32.gmra.mrb[0].mxu0 %v681
        %v1874 = vpop.f32.mrb[0].mxu0
        %v1875 = vadd.f32 0.0, %v1874
        %v1876 = vpop.f32.mrb[0].mxu0
        %1877 = vmatprep.mubr.f32.mxu0 0.0
        %1878 = vmatmul.mubr.f32.gmra.mrb[0].mxu0 %v682
        %v1879 = vpop.f32.mrb[0].mxu0
        %v1880 = vadd.f32 0.0, %v1879
        %v1881 = vpop.f32.mrb[0].mxu0
        %1882 = vdwg.mxu0
        %vm1883 = vcmp.gt.f32.partialorder %v750, 0.0
        %vm1884 = vcmp.gt.f32.partialorder %v755, 0.0
        %vm1885 = vcmp.gt.f32.partialorder %v825, 0.0
        %vm1886 = vcmp.gt.f32.partialorder %v830, 0.0
        %vm1887 = vcmp.gt.f32.partialorder %v900, 0.0
        %vm1888 = vcmp.gt.f32.partialorder %v905, 0.0
        %vm1889 = vcmp.gt.f32.partialorder %v975, 0.0
        %vm1890 = vcmp.gt.f32.partialorder %v980, 0.0
        %vm1891 = vcmp.gt.f32.partialorder %v1050, 0.0
        %vm1892 = vcmp.gt.f32.partialorder %v1055, 0.0
        %vm1893 = vcmp.gt.f32.partialorder %v1125, 0.0
        %vm1894 = vcmp.gt.f32.partialorder %v1130, 0.0
        %vm1895 = vcmp.gt.f32.partialorder %v1200, 0.0
        %vm1896 = vcmp.gt.f32.partialorder %v1205, 0.0
        %vm1897 = vcmp.gt.f32.partialorder %v1275, 0.0
        %vm1898 = vcmp.gt.f32.partialorder %v1280, 0.0
        %v1899 = vmul.f32 %v750, 0.2
        %v1900 = vmul.f32 %v755, 0.2
        %v1901 = vmul.f32 %v825, 0.2
        %v1902 = vmul.f32 %v830, 0.2
        %v1903 = vmul.f32 %v900, 0.2
        %v1904 = vmul.f32 %v905, 0.2
        %v1905 = vmul.f32 %v975, 0.2
        %v1906 = vmul.f32 %v980, 0.2
        %v1907 = vmul.f32 %v1050, 0.2
        %v1908 = vmul.f32 %v1055, 0.2
        %v1909 = vmul.f32 %v1125, 0.2
        %v1910 = vmul.f32 %v1130, 0.2
        %v1911 = vmul.f32 %v1200, 0.2
        %v1912 = vmul.f32 %v1205, 0.2
        %v1913 = vmul.f32 %v1275, 0.2
        %v1914 = vmul.f32 %v1280, 0.2
        %v1915 = vsel %vm1883, %v750, %v1899
        %v1916 = vsel %vm1884, %v755, %v1900
        %v1917 = vsel %vm1885, %v825, %v1901
        %v1918 = vsel %vm1886, %v830, %v1902
        %v1919 = vsel %vm1887, %v900, %v1903
        %v1920 = vsel %vm1888, %v905, %v1904
        %v1921 = vsel %vm1889, %v975, %v1905
        %v1922 = vsel %vm1890, %v980, %v1906
        %v1923 = vsel %vm1891, %v1050, %v1907
        %v1924 = vsel %vm1892, %v1055, %v1908
        %v1925 = vsel %vm1893, %v1125, %v1909
        %v1926 = vsel %vm1894, %v1130, %v1910
        %v1927 = vsel %vm1895, %v1200, %v1911
        %v1928 = vsel %vm1896, %v1205, %v1912
        %v1929 = vsel %vm1897, %v1275, %v1913
        %v1930 = vsel %vm1898, %v1280, %v1914
        %vm1931 = vcmp.gt.f32.partialorder %v1350, 0.0
        %vm1932 = vcmp.gt.f32.partialorder %v1355, 0.0
        %vm1933 = vcmp.gt.f32.partialorder %v1425, 0.0
        %vm1934 = vcmp.gt.f32.partialorder %v1430, 0.0
        %vm1935 = vcmp.gt.f32.partialorder %v1500, 0.0
        %vm1936 = vcmp.gt.f32.partialorder %v1505, 0.0
        %vm1937 = vcmp.gt.f32.partialorder %v1575, 0.0
        %vm1938 = vcmp.gt.f32.partialorder %v1580, 0.0
        %vm1939 = vcmp.gt.f32.partialorder %v1650, 0.0
        %vm1940 = vcmp.gt.f32.partialorder %v1655, 0.0
        %vm1941 = vcmp.gt.f32.partialorder %v1725, 0.0
        %vm1942 = vcmp.gt.f32.partialorder %v1730, 0.0
        %vm1943 = vcmp.gt.f32.partialorder %v1800, 0.0
        %vm1944 = vcmp.gt.f32.partialorder %v1805, 0.0
        %vm1945 = vcmp.gt.f32.partialorder %v1875, 0.0
        %vm1946 = vcmp.gt.f32.partialorder %v1880, 0.0
        %v1947 = vmul.f32 %v1350, 0.2
        %v1948 = vmul.f32 %v1355, 0.2
        %v1949 = vmul.f32 %v1425, 0.2
        %v1950 = vmul.f32 %v1430, 0.2
        %v1951 = vmul.f32 %v1500, 0.2
        %v1952 = vmul.f32 %v1505, 0.2
        %v1953 = vmul.f32 %v1575, 0.2
        %v1954 = vmul.f32 %v1580, 0.2
        %v1955 = vmul.f32 %v1650, 0.2
        %v1956 = vmul.f32 %v1655, 0.2
        %v1957 = vmul.f32 %v1725, 0.2
        %v1958 = vmul.f32 %v1730, 0.2
        %v1959 = vmul.f32 %v1800, 0.2
        %v1960 = vmul.f32 %v1805, 0.2
        %v1961 = vmul.f32 %v1875, 0.2
        %v1962 = vmul.f32 %v1880, 0.2
        %v1963 = vsel %vm1931, %v1350, %v1947
        %v1964 = vsel %vm1932, %v1355, %v1948
        %v1965 = vsel %vm1933, %v1425, %v1949
        %v1966 = vsel %vm1934, %v1430, %v1950
        %v1967 = vsel %vm1935, %v1500, %v1951
        %v1968 = vsel %vm1936, %v1505, %v1952
        %v1969 = vsel %vm1937, %v1575, %v1953
        %v1970 = vsel %vm1938, %v1580, %v1954
        %v1971 = vsel %vm1939, %v1650, %v1955
        %v1972 = vsel %vm1940, %v1655, %v1956
        %v1973 = vsel %vm1941, %v1725, %v1957
        %v1974 = vsel %vm1942, %v1730, %v1958
        %v1975 = vsel %vm1943, %v1800, %v1959
        %v1976 = vsel %vm1944, %v1805, %v1960
        %v1977 = vsel %vm1945, %v1875, %v1961
        %v1978 = vsel %vm1946, %v1880, %v1962
        %vm1979 = vcmp.eq.f32.partialorder %v393, 1.0
        %vm1980 = vcmp.eq.f32.partialorder %v394, 1.0
        %vm1981 = vcmp.eq.f32.partialorder %v395, 1.0
        %vm1982 = vcmp.eq.f32.partialorder %v396, 1.0
        %vm1983 = vcmp.eq.f32.partialorder %v397, 1.0
        %vm1984 = vcmp.eq.f32.partialorder %v398, 1.0
        %vm1985 = vcmp.eq.f32.partialorder %v399, 1.0
        %vm1986 = vcmp.eq.f32.partialorder %v400, 1.0
        %vm1987 = vcmp.eq.f32.partialorder %v401, 1.0
        %vm1988 = vcmp.eq.f32.partialorder %v402, 1.0
        %vm1989 = vcmp.eq.f32.partialorder %v403, 1.0
        %vm1990 = vcmp.eq.f32.partialorder %v404, 1.0
        %vm1991 = vcmp.eq.f32.partialorder %v405, 1.0
        %vm1992 = vcmp.eq.f32.partialorder %v406, 1.0
        %vm1993 = vcmp.eq.f32.partialorder %v407, 1.0
        %vm1994 = vcmp.eq.f32.partialorder %v408, 1.0
        %v1995 = vsel %vm1979, %v1915, -9e+15
        %v1996 = vsel %vm1980, %v1916, -9e+15
        %v1997 = vsel %vm1981, %v1917, -9e+15
        %v1998 = vsel %vm1982, %v1918, -9e+15
        %v1999 = vsel %vm1983, %v1919, -9e+15
        %v2000 = vsel %vm1984, %v1920, -9e+15
        %v2001 = vsel %vm1985, %v1921, -9e+15
        %v2002 = vsel %vm1986, %v1922, -9e+15
        %v2003 = vsel %vm1987, %v1923, -9e+15
        %v2004 = vsel %vm1988, %v1924, -9e+15
        %v2005 = vsel %vm1989, %v1925, -9e+15
        %v2006 = vsel %vm1990, %v1926, -9e+15
        %v2007 = vsel %vm1991, %v1927, -9e+15
        %v2008 = vsel %vm1992, %v1928, -9e+15
        %v2009 = vsel %vm1993, %v1929, -9e+15
        %v2010 = vsel %vm1994, %v1930, -9e+15
        %vm2011 = vcmp.eq.f32.partialorder %v393, 2.0
        %vm2012 = vcmp.eq.f32.partialorder %v394, 2.0
        %vm2013 = vcmp.eq.f32.partialorder %v395, 2.0
        %vm2014 = vcmp.eq.f32.partialorder %v396, 2.0
        %vm2015 = vcmp.eq.f32.partialorder %v397, 2.0
        %vm2016 = vcmp.eq.f32.partialorder %v398, 2.0
        %vm2017 = vcmp.eq.f32.partialorder %v399, 2.0
        %vm2018 = vcmp.eq.f32.partialorder %v400, 2.0
        %vm2019 = vcmp.eq.f32.partialorder %v401, 2.0
        %vm2020 = vcmp.eq.f32.partialorder %v402, 2.0
        %vm2021 = vcmp.eq.f32.partialorder %v403, 2.0
        %vm2022 = vcmp.eq.f32.partialorder %v404, 2.0
        %vm2023 = vcmp.eq.f32.partialorder %v405, 2.0
        %vm2024 = vcmp.eq.f32.partialorder %v406, 2.0
        %vm2025 = vcmp.eq.f32.partialorder %v407, 2.0
        %vm2026 = vcmp.eq.f32.partialorder %v408, 2.0
        %v2027 = vsel %vm2011, %v1963, %v1995
        %v2028 = vsel %vm2012, %v1964, %v1996
        %v2029 = vsel %vm2013, %v1965, %v1997
        %v2030 = vsel %vm2014, %v1966, %v1998
        %v2031 = vsel %vm2015, %v1967, %v1999
        %v2032 = vsel %vm2016, %v1968, %v2000
        %v2033 = vsel %vm2017, %v1969, %v2001
        %v2034 = vsel %vm2018, %v1970, %v2002
        %v2035 = vsel %vm2019, %v1971, %v2003
        %v2036 = vsel %vm2020, %v1972, %v2004
        %v2037 = vsel %vm2021, %v1973, %v2005
        %v2038 = vsel %vm2022, %v1974, %v2006
        %v2039 = vsel %vm2023, %v1975, %v2007
        %v2040 = vsel %vm2024, %v1976, %v2008
        %v2041 = vsel %vm2025, %v1977, %v2009
        %v2042 = vsel %vm2026, %v1978, %v2010
        %vm2043 = vcmask 130048
        %v2044 = vsel %vm2043, %v2027, -inf
        %2045 = vmax.xlane.f32.xlu0 %v2044
        %v2046 = vpop.xlane.xlu0 %2045
        %v2047 = vsel %vm2043, %v2028, -inf
        %2048 = vmax.xlane.f32.xlu0 %v2047
        %v2049 = vpop.xlane.xlu0 %2048
        %v2050 = vsel %vm2043, %v2029, -inf
        %2051 = vmax.xlane.f32.xlu0 %v2050
        %v2052 = vpop.xlane.xlu0 %2051
        %v2053 = vsel %vm2043, %v2030, -inf
        %2054 = vmax.xlane.f32.xlu0 %v2053
        %v2055 = vpop.xlane.xlu0 %2054
        %v2056 = vsel %vm2043, %v2031, -inf
        %2057 = vmax.xlane.f32.xlu0 %v2056
        %v2058 = vpop.xlane.xlu0 %2057
        %v2059 = vsel %vm2043, %v2032, -inf
        %2060 = vmax.xlane.f32.xlu0 %v2059
        %v2061 = vpop.xlane.xlu0 %2060
        %v2062 = vsel %vm2043, %v2033, -inf
        %2063 = vmax.xlane.f32.xlu0 %v2062
        %v2064 = vpop.xlane.xlu0 %2063
        %v2065 = vsel %vm2043, %v2034, -inf
        %2066 = vmax.xlane.f32.xlu0 %v2065
        %v2067 = vpop.xlane.xlu0 %2066
        %v2068 = vsel %vm2043, %v2035, -inf
        %2069 = vmax.xlane.f32.xlu0 %v2068
        %v2070 = vpop.xlane.xlu0 %2069
        %v2071 = vsel %vm2043, %v2036, -inf
        %2072 = vmax.xlane.f32.xlu0 %v2071
        %v2073 = vpop.xlane.xlu0 %2072
        %v2074 = vsel %vm2043, %v2037, -inf
        %2075 = vmax.xlane.f32.xlu0 %v2074
        %v2076 = vpop.xlane.xlu0 %2075
        %v2077 = vsel %vm2043, %v2038, -inf
        %2078 = vmax.xlane.f32.xlu0 %v2077
        %v2079 = vpop.xlane.xlu0 %2078
        %v2080 = vsel %vm2043, %v2039, -inf
        %2081 = vmax.xlane.f32.xlu0 %v2080
        %v2082 = vpop.xlane.xlu0 %2081
        %v2083 = vsel %vm2043, %v2040, -inf
        %2084 = vmax.xlane.f32.xlu0 %v2083
        %v2085 = vpop.xlane.xlu0 %2084
        %v2086 = vsel %vm2043, %v2041, -inf
        %2087 = vmax.xlane.f32.xlu0 %v2086
        %v2088 = vpop.xlane.xlu0 %2087
        %v2089 = vsel %vm2043, %v2042, -inf
        %2090 = vmax.xlane.f32.xlu0 %v2089
        %v2091 = vpop.xlane.xlu0 %2090
        %v2092 = vsub.f32 %v2027, %v2046
        %v2093 = vsub.f32 %v2028, %v2049
        %v2094 = vsub.f32 %v2029, %v2052
        %v2095 = vsub.f32 %v2030, %v2055
        %v2096 = vsub.f32 %v2031, %v2058
        %v2097 = vsub.f32 %v2032, %v2061
        %v2098 = vsub.f32 %v2033, %v2064
        %v2099 = vsub.f32 %v2034, %v2067
        %v2100 = vsub.f32 %v2035, %v2070
        %v2101 = vsub.f32 %v2036, %v2073
        %v2102 = vsub.f32 %v2037, %v2076
        %v2103 = vsub.f32 %v2038, %v2079
        %v2104 = vsub.f32 %v2039, %v2082
        %v2105 = vsub.f32 %v2040, %v2085
        %v2106 = vsub.f32 %v2041, %v2088
        %v2107 = vsub.f32 %v2042, %v2091
        %v2108 = vmul.f32 %v2092, 1.442695
        %v2109 = vpow.pop %v2108
        %v2110 = vmul.f32 %v2093, 1.442695
        %v2111 = vpow.pop %v2110
        %v2112 = vmul.f32 %v2094, 1.442695
        %v2113 = vpow.pop %v2112
        %v2114 = vmul.f32 %v2095, 1.442695
        %v2115 = vpow.pop %v2114
        %v2116 = vmul.f32 %v2096, 1.442695
        %v2117 = vpow.pop %v2116
        %v2118 = vmul.f32 %v2097, 1.442695
        %v2119 = vpow.pop %v2118
        %v2120 = vmul.f32 %v2098, 1.442695
        %v2121 = vpow.pop %v2120
        %v2122 = vmul.f32 %v2099, 1.442695
        %v2123 = vpow.pop %v2122
        %v2124 = vmul.f32 %v2100, 1.442695
        %v2125 = vpow.pop %v2124
        %v2126 = vmul.f32 %v2101, 1.442695
        %v2127 = vpow.pop %v2126
        %v2128 = vmul.f32 %v2102, 1.442695
        %v2129 = vpow.pop %v2128
        %v2130 = vmul.f32 %v2103, 1.442695
        %v2131 = vpow.pop %v2130
        %v2132 = vmul.f32 %v2104, 1.442695
        %v2133 = vpow.pop %v2132
        %v2134 = vmul.f32 %v2105, 1.442695
        %v2135 = vpow.pop %v2134
        %v2136 = vmul.f32 %v2106, 1.442695
        %v2137 = vpow.pop %v2136
        %v2138 = vmul.f32 %v2107, 1.442695
        %v2139 = vpow.pop %v2138
        %v2140 = vsel %vm2043, %v2109, 0.0
        %2141 = vadd.xlane.f32.xlu0 %v2140
        %v2142 = vpop.xlane.xlu0 %2141
        %v2143 = vsel %vm2043, %v2111, 0.0
        %2144 = vadd.xlane.f32.xlu0 %v2143
        %v2145 = vpop.xlane.xlu0 %2144
        %v2146 = vsel %vm2043, %v2113, 0.0
        %2147 = vadd.xlane.f32.xlu0 %v2146
        %v2148 = vpop.xlane.xlu0 %2147
        %v2149 = vsel %vm2043, %v2115, 0.0
        %2150 = vadd.xlane.f32.xlu0 %v2149
        %v2151 = vpop.xlane.xlu0 %2150
        %v2152 = vsel %vm2043, %v2117, 0.0
        %2153 = vadd.xlane.f32.xlu0 %v2152
        %v2154 = vpop.xlane.xlu0 %2153
        %v2155 = vsel %vm2043, %v2119, 0.0
        %2156 = vadd.xlane.f32.xlu0 %v2155
        %v2157 = vpop.xlane.xlu0 %2156
        %v2158 = vsel %vm2043, %v2121, 0.0
        %2159 = vadd.xlane.f32.xlu0 %v2158
        %v2160 = vpop.xlane.xlu0 %2159
        %v2161 = vsel %vm2043, %v2123, 0.0
        %2162 = vadd.xlane.f32.xlu0 %v2161
        %v2163 = vpop.xlane.xlu0 %2162
        %v2164 = vsel %vm2043, %v2125, 0.0
        %2165 = vadd.xlane.f32.xlu0 %v2164
        %v2166 = vpop.xlane.xlu0 %2165
        %v2167 = vsel %vm2043, %v2127, 0.0
        %2168 = vadd.xlane.f32.xlu0 %v2167
        %v2169 = vpop.xlane.xlu0 %2168
        %v2170 = vsel %vm2043, %v2129, 0.0
        %2171 = vadd.xlane.f32.xlu0 %v2170
        %v2172 = vpop.xlane.xlu0 %2171
        %v2173 = vsel %vm2043, %v2131, 0.0
        %2174 = vadd.xlane.f32.xlu0 %v2173
        %v2175 = vpop.xlane.xlu0 %2174
        %v2176 = vsel %vm2043, %v2133, 0.0
        %2177 = vadd.xlane.f32.xlu0 %v2176
        %v2178 = vpop.xlane.xlu0 %2177
        %v2179 = vsel %vm2043, %v2135, 0.0
        %2180 = vadd.xlane.f32.xlu0 %v2179
        %v2181 = vpop.xlane.xlu0 %2180
        %v2182 = vsel %vm2043, %v2137, 0.0
        %2183 = vadd.xlane.f32.xlu0 %v2182
        %v2184 = vpop.xlane.xlu0 %2183
        %v2185 = vsel %vm2043, %v2139, 0.0
        %2186 = vadd.xlane.f32.xlu0 %v2185
        %v2187 = vpop.xlane.xlu0 %2186
        %v2188 = vrcp.pop %v2142
        %v2189 = vmul.f32 1.0, %v2188
        %v2190 = vrcp.pop %v2145
        %v2191 = vmul.f32 1.0, %v2190
        %v2192 = vrcp.pop %v2148
        %v2193 = vmul.f32 1.0, %v2192
        %v2194 = vrcp.pop %v2151
        %v2195 = vmul.f32 1.0, %v2194
        %v2196 = vrcp.pop %v2154
        %v2197 = vmul.f32 1.0, %v2196
        %v2198 = vrcp.pop %v2157
        %v2199 = vmul.f32 1.0, %v2198
        %v2200 = vrcp.pop %v2160
        %v2201 = vmul.f32 1.0, %v2200
        %v2202 = vrcp.pop %v2163
        %v2203 = vmul.f32 1.0, %v2202
        %v2204 = vrcp.pop %v2166
        %v2205 = vmul.f32 1.0, %v2204
        %v2206 = vrcp.pop %v2169
        %v2207 = vmul.f32 1.0, %v2206
        %v2208 = vrcp.pop %v2172
        %v2209 = vmul.f32 1.0, %v2208
        %v2210 = vrcp.pop %v2175
        %v2211 = vmul.f32 1.0, %v2210
        %v2212 = vrcp.pop %v2178
        %v2213 = vmul.f32 1.0, %v2212
        %v2214 = vrcp.pop %v2181
        %v2215 = vmul.f32 1.0, %v2214
        %v2216 = vrcp.pop %v2184
        %v2217 = vmul.f32 1.0, %v2216
        %v2218 = vrcp.pop %v2187
        %v2219 = vmul.f32 1.0, %v2218
        %v2220 = vmul.f32 %v2109, %v2189
        %v2221 = vmul.f32 %v2111, %v2191
        %v2222 = vmul.f32 %v2113, %v2193
        %v2223 = vmul.f32 %v2115, %v2195
        %v2224 = vmul.f32 %v2117, %v2197
        %v2225 = vmul.f32 %v2119, %v2199
        %v2226 = vmul.f32 %v2121, %v2201
        %v2227 = vmul.f32 %v2123, %v2203
        %v2228 = vmul.f32 %v2125, %v2205
        %v2229 = vmul.f32 %v2127, %v2207
        %v2230 = vmul.f32 %v2129, %v2209
        %v2231 = vmul.f32 %v2131, %v2211
        %v2232 = vmul.f32 %v2133, %v2213
        %v2233 = vmul.f32 %v2135, %v2215
        %v2234 = vmul.f32 %v2137, %v2217
        %v2235 = vmul.f32 %v2139, %v2219
        %v2237 = vsel %vm2043, %v2220, 0
        %v2240 = vsel %vm2043, %v2221, 0
        %2242 = vmatprep.subr.mxu0 0.0
        %2243 = vmatpush1.msra.mxu0 %v376
        %2244 = vmatprep.subr.mxu0 0.0
        %2245 = vmatpush1.msra.mxu0 %v377
        %2246 = vmatprep.subr.mxu0 0.0
        %2247 = vmatpush1.msra.mxu0 0.0
        %2248 = vmatprep.subr.mxu0 0.0
        %2249 = vmatpush1.msra.mxu0 0.0
        %2250 = vmatprep.subr.mxu0 0.0
        %2251 = vmatpush1.msra.mxu0 0.0
        %2252 = vmatprep.subr.mxu0 0.0
        %2253 = vmatpush1.msra.mxu0 0.0
        %2254 = vmatprep.subr.mxu0 0.0
        %2255 = vmatpush1.msra.mxu0 0.0
        %2256 = vmatprep.subr.mxu0 0.0
        %2257 = vmatpush1.msra.mxu0 0.0
        %2258 = vmatprep.subr.mxu0 0.0
        %2259 = vmatpush1.msra.mxu0 0.0
        %2260 = vmatprep.subr.mxu0 0.0
        %2261 = vmatpush1.msra.mxu0 0.0
        %2262 = vmatprep.subr.mxu0 0.0
        %2263 = vmatpush1.msra.mxu0 0.0
        %2264 = vmatprep.subr.mxu0 0.0
        %2265 = vmatpush1.msra.mxu0 0.0
        %2266 = vmatprep.subr.mxu0 0.0
        %2267 = vmatpush1.msra.mxu0 0.0
        %2268 = vmatprep.subr.mxu0 0.0
        %2269 = vmatpush1.msra.mxu0 0.0
        %2270 = vmatprep.subr.mxu0 0.0
        %2271 = vmatpush1.msra.mxu0 0.0
        %2272 = vmatprep.subr.mxu0 0.0
        %2273 = vmatpush1.msra.mxu0 0.0
        %2274 = vmatprep.subr.mxu0 0.0
        %2275 = vmatpush1.msra.mxu0 0.0
        %2276 = vmatprep.subr.mxu0 0.0
        %2277 = vmatpush1.msra.mxu0 0.0
        %2278 = vmatprep.subr.mxu0 0.0
        %2279 = vmatpush1.msra.mxu0 0.0
        %2280 = vmatprep.subr.mxu0 0.0
        %2281 = vmatpush1.msra.mxu0 0.0
        %2282 = vmatprep.subr.mxu0 0.0
        %2283 = vmatpush1.msra.mxu0 0.0
        %2284 = vmatprep.subr.mxu0 0.0
        %2285 = vmatpush1.msra.mxu0 0.0
        %2286 = vmatprep.subr.mxu0 0.0
        %2287 = vmatpush1.msra.mxu0 0.0
        %2288 = vmatprep.subr.mxu0 0.0
        %2289 = vmatpush1.msra.mxu0 0.0
        %2290 = vmatprep.subr.mxu0 0.0
        %2291 = vmatpush1.msra.mxu0 0.0
        %2292 = vmatprep.subr.mxu0 0.0
        %2293 = vmatpush1.msra.mxu0 0.0
        %2294 = vmatprep.subr.mxu0 0.0
        %2295 = vmatpush1.msra.mxu0 0.0
        %2296 = vmatprep.subr.mxu0 0.0
        %2297 = vmatpush1.msra.mxu0 0.0
        %2298 = vmatprep.subr.mxu0 0.0
        %2299 = vmatpush1.msra.mxu0 0.0
        %2300 = vmatprep.subr.mxu0 0.0
        %2301 = vmatpush1.msra.mxu0 0.0
        %2302 = vmatprep.subr.mxu0 0.0
        %2303 = vmatpush1.msra.mxu0 0.0
        %2304 = vmatprep.subr.mxu0 0.0
        %2305 = vmatpush1.msra.mxu0 0.0
        %2306 = vmatprep.mubr.f32.mxu0 0.0
        %2307 = vmatmul.mubr.f32.gmra.mrb[0].mxu0 %v2237
        %v2308 = vpop.f32.mrb[0].mxu0
        %v2309 = vadd.f32 0.0, %v2308
        %v2310 = vpop.f32.mrb[0].mxu0
        %2311 = vmatprep.mubr.f32.mxu0 0.0
        %2312 = vmatmul.mubr.f32.gmra.mrb[0].mxu0 %v2240
        %v2313 = vpop.f32.mrb[0].mxu0
        %v2314 = vadd.f32 0.0, %v2313
        %v2315 = vpop.f32.mrb[0].mxu0
        %2316 = vdwg.mxu0
        %v2318 = vsel %vm2043, %v2222, 0
        %v2321 = vsel %vm2043, %v2223, 0
        %2323 = vmatprep.subr.mxu0 0.0
        %2324 = vmatpush1.msra.mxu0 %v378
        %2325 = vmatprep.subr.mxu0 0.0
        %2326 = vmatpush1.msra.mxu0 %v379
        %2327 = vmatprep.subr.mxu0 0.0
        %2328 = vmatpush1.msra.mxu0 0.0
        %2329 = vmatprep.subr.mxu0 0.0
        %2330 = vmatpush1.msra.mxu0 0.0
        %2331 = vmatprep.subr.mxu0 0.0
        %2332 = vmatpush1.msra.mxu0 0.0
        %2333 = vmatprep.subr.mxu0 0.0
        %2334 = vmatpush1.msra.mxu0 0.0
        %2335 = vmatprep.subr.mxu0 0.0
        %2336 = vmatpush1.msra.mxu0 0.0
        %2337 = vmatprep.subr.mxu0 0.0
        %2338 = vmatpush1.msra.mxu0 0.0
        %2339 = vmatprep.subr.mxu0 0.0
        %2340 = vmatpush1.msra.mxu0 0.0
        %2341 = vmatprep.subr.mxu0 0.0
        %2342 = vmatpush1.msra.mxu0 0.0
        %2343 = vmatprep.subr.mxu0 0.0
        %2344 = vmatpush1.msra.mxu0 0.0
        %2345 = vmatprep.subr.mxu0 0.0
        %2346 = vmatpush1.msra.mxu0 0.0
        %2347 = vmatprep.subr.mxu0 0.0
        %2348 = vmatpush1.msra.mxu0 0.0
        %2349 = vmatprep.subr.mxu0 0.0
        %2350 = vmatpush1.msra.mxu0 0.0
        %2351 = vmatprep.subr.mxu0 0.0
        %2352 = vmatpush1.msra.mxu0 0.0
        %2353 = vmatprep.subr.mxu0 0.0
        %2354 = vmatpush1.msra.mxu0 0.0
        %2355 = vmatprep.subr.mxu0 0.0
        %2356 = vmatpush1.msra.mxu0 0.0
        %2357 = vmatprep.subr.mxu0 0.0
        %2358 = vmatpush1.msra.mxu0 0.0
        %2359 = vmatprep.subr.mxu0 0.0
        %2360 = vmatpush1.msra.mxu0 0.0
        %2361 = vmatprep.subr.mxu0 0.0
        %2362 = vmatpush1.msra.mxu0 0.0
        %2363 = vmatprep.subr.mxu0 0.0
        %2364 = vmatpush1.msra.mxu0 0.0
        %2365 = vmatprep.subr.mxu0 0.0
        %2366 = vmatpush1.msra.mxu0 0.0
        %2367 = vmatprep.subr.mxu0 0.0
        %2368 = vmatpush1.msra.mxu0 0.0
        %2369 = vmatprep.subr.mxu0 0.0
        %2370 = vmatpush1.msra.mxu0 0.0
        %2371 = vmatprep.subr.mxu0 0.0
        %2372 = vmatpush1.msra.mxu0 0.0
        %2373 = vmatprep.subr.mxu0 0.0
        %2374 = vmatpush1.msra.mxu0 0.0
        %2375 = vmatprep.subr.mxu0 0.0
        %2376 = vmatpush1.msra.mxu0 0.0
        %2377 = vmatprep.subr.mxu0 0.0
        %2378 = vmatpush1.msra.mxu0 0.0
        %2379 = vmatprep.subr.mxu0 0.0
        %2380 = vmatpush1.msra.mxu0 0.0
        %2381 = vmatprep.subr.mxu0 0.0
        %2382 = vmatpush1.msra.mxu0 0.0
        %2383 = vmatprep.subr.mxu0 0.0
        %2384 = vmatpush1.msra.mxu0 0.0
        %2385 = vmatprep.subr.mxu0 0.0
        %2386 = vmatpush1.msra.mxu0 0.0
        %2387 = vmatprep.mubr.f32.mxu0 0.0
        %2388 = vmatmul.mubr.f32.gmra.mrb[0].mxu0 %v2318
        %v2389 = vpop.f32.mrb[0].mxu0
        %v2390 = vadd.f32 0.0, %v2389
        %v2391 = vpop.f32.mrb[0].mxu0
        %2392 = vmatprep.mubr.f32.mxu0 0.0
        %2393 = vmatmul.mubr.f32.gmra.mrb[0].mxu0 %v2321
        %v2394 = vpop.f32.mrb[0].mxu0
        %v2395 = vadd.f32 0.0, %v2394
        %v2396 = vpop.f32.mrb[0].mxu0
        %2397 = vdwg.mxu0
        %v2399 = vsel %vm2043, %v2224, 0
        %v2402 = vsel %vm2043, %v2225, 0
        %2404 = vmatprep.subr.mxu0 0.0
        %2405 = vmatpush1.msra.mxu0 %v380
        %2406 = vmatprep.subr.mxu0 0.0
        %2407 = vmatpush1.msra.mxu0 %v381
        %2408 = vmatprep.subr.mxu0 0.0
        %2409 = vmatpush1.msra.mxu0 0.0
        %2410 = vmatprep.subr.mxu0 0.0
        %2411 = vmatpush1.msra.mxu0 0.0
        %2412 = vmatprep.subr.mxu0 0.0
        %2413 = vmatpush1.msra.mxu0 0.0
        %2414 = vmatprep.subr.mxu0 0.0
        %2415 = vmatpush1.msra.mxu0 0.0
        %2416 = vmatprep.subr.mxu0 0.0
        %2417 = vmatpush1.msra.mxu0 0.0
        %2418 = vmatprep.subr.mxu0 0.0
        %2419 = vmatpush1.msra.mxu0 0.0
        %2420 = vmatprep.subr.mxu0 0.0
        %2421 = vmatpush1.msra.mxu0 0.0
        %2422 = vmatprep.subr.mxu0 0.0
        %2423 = vmatpush1.msra.mxu0 0.0
        %2424 = vmatprep.subr.mxu0 0.0
        %2425 = vmatpush1.msra.mxu0 0.0
        %2426 = vmatprep.subr.mxu0 0.0
        %2427 = vmatpush1.msra.mxu0 0.0
        %2428 = vmatprep.subr.mxu0 0.0
        %2429 = vmatpush1.msra.mxu0 0.0
        %2430 = vmatprep.subr.mxu0 0.0
        %2431 = vmatpush1.msra.mxu0 0.0
        %2432 = vmatprep.subr.mxu0 0.0
        %2433 = vmatpush1.msra.mxu0 0.0
        %2434 = vmatprep.subr.mxu0 0.0
        %2435 = vmatpush1.msra.mxu0 0.0
        %2436 = vmatprep.subr.mxu0 0.0
        %2437 = vmatpush1.msra.mxu0 0.0
        %2438 = vmatprep.subr.mxu0 0.0
        %2439 = vmatpush1.msra.mxu0 0.0
        %2440 = vmatprep.subr.mxu0 0.0
        %2441 = vmatpush1.msra.mxu0 0.0
        %2442 = vmatprep.subr.mxu0 0.0
        %2443 = vmatpush1.msra.mxu0 0.0
        %2444 = vmatprep.subr.mxu0 0.0
        %2445 = vmatpush1.msra.mxu0 0.0
        %2446 = vmatprep.subr.mxu0 0.0
        %2447 = vmatpush1.msra.mxu0 0.0
        %2448 = vmatprep.subr.mxu0 0.0
        %2449 = vmatpush1.msra.mxu0 0.0
        %2450 = vmatprep.subr.mxu0 0.0
        %2451 = vmatpush1.msra.mxu0 0.0
        %2452 = vmatprep.subr.mxu0 0.0
        %2453 = vmatpush1.msra.mxu0 0.0
        %2454 = vmatprep.subr.mxu0 0.0
        %2455 = vmatpush1.msra.mxu0 0.0
        %2456 = vmatprep.subr.mxu0 0.0
        %2457 = vmatpush1.msra.mxu0 0.0
        %2458 = vmatprep.subr.mxu0 0.0
        %2459 = vmatpush1.msra.mxu0 0.0
        %2460 = vmatprep.subr.mxu0 0.0
        %2461 = vmatpush1.msra.mxu0 0.0
        %2462 = vmatprep.subr.mxu0 0.0
        %2463 = vmatpush1.msra.mxu0 0.0
        %2464 = vmatprep.subr.mxu0 0.0
        %2465 = vmatpush1.msra.mxu0 0.0
        %2466 = vmatprep.subr.mxu0 0.0
        %2467 = vmatpush1.msra.mxu0 0.0
        %2468 = vmatprep.mubr.f32.mxu0 0.0
        %2469 = vmatmul.mubr.f32.gmra.mrb[0].mxu0 %v2399
        %v2470 = vpop.f32.mrb[0].mxu0
        %v2471 = vadd.f32 0.0, %v2470
        %v2472 = vpop.f32.mrb[0].mxu0
        %2473 = vmatprep.mubr.f32.mxu0 0.0
        %2474 = vmatmul.mubr.f32.gmra.mrb[0].mxu0 %v2402
        %v2475 = vpop.f32.mrb[0].mxu0
        %v2476 = vadd.f32 0.0, %v2475
        %v2477 = vpop.f32.mrb[0].mxu0
        %2478 = vdwg.mxu0
        %v2480 = vsel %vm2043, %v2226, 0
        %v2483 = vsel %vm2043, %v2227, 0
        %2485 = vmatprep.subr.mxu0 0.0
        %2486 = vmatpush1.msra.mxu0 %v382
        %2487 = vmatprep.subr.mxu0 0.0
        %2488 = vmatpush1.msra.mxu0 %v383
        %2489 = vmatprep.subr.mxu0 0.0
        %2490 = vmatpush1.msra.mxu0 0.0
        %2491 = vmatprep.subr.mxu0 0.0
        %2492 = vmatpush1.msra.mxu0 0.0
        %2493 = vmatprep.subr.mxu0 0.0
        %2494 = vmatpush1.msra.mxu0 0.0
        %2495 = vmatprep.subr.mxu0 0.0
        %2496 = vmatpush1.msra.mxu0 0.0
        %2497 = vmatprep.subr.mxu0 0.0
        %2498 = vmatpush1.msra.mxu0 0.0
        %2499 = vmatprep.subr.mxu0 0.0
        %2500 = vmatpush1.msra.mxu0 0.0
        %2501 = vmatprep.subr.mxu0 0.0
        %2502 = vmatpush1.msra.mxu0 0.0
        %2503 = vmatprep.subr.mxu0 0.0
        %2504 = vmatpush1.msra.mxu0 0.0
        %2505 = vmatprep.subr.mxu0 0.0
        %2506 = vmatpush1.msra.mxu0 0.0
        %2507 = vmatprep.subr.mxu0 0.0
        %2508 = vmatpush1.msra.mxu0 0.0
        %2509 = vmatprep.subr.mxu0 0.0
        %2510 = vmatpush1.msra.mxu0 0.0
        %2511 = vmatprep.subr.mxu0 0.0
        %2512 = vmatpush1.msra.mxu0 0.0
        %2513 = vmatprep.subr.mxu0 0.0
        %2514 = vmatpush1.msra.mxu0 0.0
        %2515 = vmatprep.subr.mxu0 0.0
        %2516 = vmatpush1.msra.mxu0 0.0
        %2517 = vmatprep.subr.mxu0 0.0
        %2518 = vmatpush1.msra.mxu0 0.0
        %2519 = vmatprep.subr.mxu0 0.0
        %2520 = vmatpush1.msra.mxu0 0.0
        %2521 = vmatprep.subr.mxu0 0.0
        %2522 = vmatpush1.msra.mxu0 0.0
        %2523 = vmatprep.subr.mxu0 0.0
        %2524 = vmatpush1.msra.mxu0 0.0
        %2525 = vmatprep.subr.mxu0 0.0
        %2526 = vmatpush1.msra.mxu0 0.0
        %2527 = vmatprep.subr.mxu0 0.0
        %2528 = vmatpush1.msra.mxu0 0.0
        %2529 = vmatprep.subr.mxu0 0.0
        %2530 = vmatpush1.msra.mxu0 0.0
        %2531 = vmatprep.subr.mxu0 0.0
        %2532 = vmatpush1.msra.mxu0 0.0
        %2533 = vmatprep.subr.mxu0 0.0
        %2534 = vmatpush1.msra.mxu0 0.0
        %2535 = vmatprep.subr.mxu0 0.0
        %2536 = vmatpush1.msra.mxu0 0.0
        %2537 = vmatprep.subr.mxu0 0.0
        %2538 = vmatpush1.msra.mxu0 0.0
        %2539 = vmatprep.subr.mxu0 0.0
        %2540 = vmatpush1.msra.mxu0 0.0
        %2541 = vmatprep.subr.mxu0 0.0
        %2542 = vmatpush1.msra.mxu0 0.0
        %2543 = vmatprep.subr.mxu0 0.0
        %2544 = vmatpush1.msra.mxu0 0.0
        %2545 = vmatprep.subr.mxu0 0.0
        %2546 = vmatpush1.msra.mxu0 0.0
        %2547 = vmatprep.subr.mxu0 0.0
        %2548 = vmatpush1.msra.mxu0 0.0
        %2549 = vmatprep.mubr.f32.mxu0 0.0
        %2550 = vmatmul.mubr.f32.gmra.mrb[0].mxu0 %v2480
        %v2551 = vpop.f32.mrb[0].mxu0
        %v2552 = vadd.f32 0.0, %v2551
        %v2553 = vpop.f32.mrb[0].mxu0
        %2554 = vmatprep.mubr.f32.mxu0 0.0
        %2555 = vmatmul.mubr.f32.gmra.mrb[0].mxu0 %v2483
        %v2556 = vpop.f32.mrb[0].mxu0
        %v2557 = vadd.f32 0.0, %v2556
        %v2558 = vpop.f32.mrb[0].mxu0
        %2559 = vdwg.mxu0
        %v2561 = vsel %vm2043, %v2228, 0
        %v2564 = vsel %vm2043, %v2229, 0
        %2566 = vmatprep.subr.mxu0 0.0
        %2567 = vmatpush1.msra.mxu0 %v384
        %2568 = vmatprep.subr.mxu0 0.0
        %2569 = vmatpush1.msra.mxu0 %v385
        %2570 = vmatprep.subr.mxu0 0.0
        %2571 = vmatpush1.msra.mxu0 0.0
        %2572 = vmatprep.subr.mxu0 0.0
        %2573 = vmatpush1.msra.mxu0 0.0
        %2574 = vmatprep.subr.mxu0 0.0
        %2575 = vmatpush1.msra.mxu0 0.0
        %2576 = vmatprep.subr.mxu0 0.0
        %2577 = vmatpush1.msra.mxu0 0.0
        %2578 = vmatprep.subr.mxu0 0.0
        %2579 = vmatpush1.msra.mxu0 0.0
        %2580 = vmatprep.subr.mxu0 0.0
        %2581 = vmatpush1.msra.mxu0 0.0
        %2582 = vmatprep.subr.mxu0 0.0
        %2583 = vmatpush1.msra.mxu0 0.0
        %2584 = vmatprep.subr.mxu0 0.0
        %2585 = vmatpush1.msra.mxu0 0.0
        %2586 = vmatprep.subr.mxu0 0.0
        %2587 = vmatpush1.msra.mxu0 0.0
        %2588 = vmatprep.subr.mxu0 0.0
        %2589 = vmatpush1.msra.mxu0 0.0
        %2590 = vmatprep.subr.mxu0 0.0
        %2591 = vmatpush1.msra.mxu0 0.0
        %2592 = vmatprep.subr.mxu0 0.0
        %2593 = vmatpush1.msra.mxu0 0.0
        %2594 = vmatprep.subr.mxu0 0.0
        %2595 = vmatpush1.msra.mxu0 0.0
        %2596 = vmatprep.subr.mxu0 0.0
        %2597 = vmatpush1.msra.mxu0 0.0
        %2598 = vmatprep.subr.mxu0 0.0
        %2599 = vmatpush1.msra.mxu0 0.0
        %2600 = vmatprep.subr.mxu0 0.0
        %2601 = vmatpush1.msra.mxu0 0.0
        %2602 = vmatprep.subr.mxu0 0.0
        %2603 = vmatpush1.msra.mxu0 0.0
        %2604 = vmatprep.subr.mxu0 0.0
        %2605 = vmatpush1.msra.mxu0 0.0
        %2606 = vmatprep.subr.mxu0 0.0
        %2607 = vmatpush1.msra.mxu0 0.0
        %2608 = vmatprep.subr.mxu0 0.0
        %2609 = vmatpush1.msra.mxu0 0.0
        %2610 = vmatprep.subr.mxu0 0.0
        %2611 = vmatpush1.msra.mxu0 0.0
        %2612 = vmatprep.subr.mxu0 0.0
        %2613 = vmatpush1.msra.mxu0 0.0
        %2614 = vmatprep.subr.mxu0 0.0
        %2615 = vmatpush1.msra.mxu0 0.0
        %2616 = vmatprep.subr.mxu0 0.0
        %2617 = vmatpush1.msra.mxu0 0.0
        %2618 = vmatprep.subr.mxu0 0.0
        %2619 = vmatpush1.msra.mxu0 0.0
        %2620 = vmatprep.subr.mxu0 0.0
        %2621 = vmatpush1.msra.mxu0 0.0
        %2622 = vmatprep.subr.mxu0 0.0
        %2623 = vmatpush1.msra.mxu0 0.0
        %2624 = vmatprep.subr.mxu0 0.0
        %2625 = vmatpush1.msra.mxu0 0.0
        %2626 = vmatprep.subr.mxu0 0.0
        %2627 = vmatpush1.msra.mxu0 0.0
        %2628 = vmatprep.subr.mxu0 0.0
        %2629 = vmatpush1.msra.mxu0 0.0
        %2630 = vmatprep.mubr.f32.mxu0 0.0
        %2631 = vmatmul.mubr.f32.gmra.mrb[0].mxu0 %v2561
        %v2632 = vpop.f32.mrb[0].mxu0
        %v2633 = vadd.f32 0.0, %v2632
        %v2634 = vpop.f32.mrb[0].mxu0
        %2635 = vmatprep.mubr.f32.mxu0 0.0
        %2636 = vmatmul.mubr.f32.gmra.mrb[0].mxu0 %v2564
        %v2637 = vpop.f32.mrb[0].mxu0
        %v2638 = vadd.f32 0.0, %v2637
        %v2639 = vpop.f32.mrb[0].mxu0
        %2640 = vdwg.mxu0
        %v2642 = vsel %vm2043, %v2230, 0
        %v2645 = vsel %vm2043, %v2231, 0
        %2647 = vmatprep.subr.mxu0 0.0
        %2648 = vmatpush1.msra.mxu0 %v386
        %2649 = vmatprep.subr.mxu0 0.0
        %2650 = vmatpush1.msra.mxu0 %v387
        %2651 = vmatprep.subr.mxu0 0.0
        %2652 = vmatpush1.msra.mxu0 0.0
        %2653 = vmatprep.subr.mxu0 0.0
        %2654 = vmatpush1.msra.mxu0 0.0
        %2655 = vmatprep.subr.mxu0 0.0
        %2656 = vmatpush1.msra.mxu0 0.0
        %2657 = vmatprep.subr.mxu0 0.0
        %2658 = vmatpush1.msra.mxu0 0.0
        %2659 = vmatprep.subr.mxu0 0.0
        %2660 = vmatpush1.msra.mxu0 0.0
        %2661 = vmatprep.subr.mxu0 0.0
        %2662 = vmatpush1.msra.mxu0 0.0
        %2663 = vmatprep.subr.mxu0 0.0
        %2664 = vmatpush1.msra.mxu0 0.0
        %2665 = vmatprep.subr.mxu0 0.0
        %2666 = vmatpush1.msra.mxu0 0.0
        %2667 = vmatprep.subr.mxu0 0.0
        %2668 = vmatpush1.msra.mxu0 0.0
        %2669 = vmatprep.subr.mxu0 0.0
        %2670 = vmatpush1.msra.mxu0 0.0
        %2671 = vmatprep.subr.mxu0 0.0
        %2672 = vmatpush1.msra.mxu0 0.0
        %2673 = vmatprep.subr.mxu0 0.0
        %2674 = vmatpush1.msra.mxu0 0.0
        %2675 = vmatprep.subr.mxu0 0.0
        %2676 = vmatpush1.msra.mxu0 0.0
        %2677 = vmatprep.subr.mxu0 0.0
        %2678 = vmatpush1.msra.mxu0 0.0
        %2679 = vmatprep.subr.mxu0 0.0
        %2680 = vmatpush1.msra.mxu0 0.0
        %2681 = vmatprep.subr.mxu0 0.0
        %2682 = vmatpush1.msra.mxu0 0.0
        %2683 = vmatprep.subr.mxu0 0.0
        %2684 = vmatpush1.msra.mxu0 0.0
        %2685 = vmatprep.subr.mxu0 0.0
        %2686 = vmatpush1.msra.mxu0 0.0
        %2687 = vmatprep.subr.mxu0 0.0
        %2688 = vmatpush1.msra.mxu0 0.0
        %2689 = vmatprep.subr.mxu0 0.0
        %2690 = vmatpush1.msra.mxu0 0.0
        %2691 = vmatprep.subr.mxu0 0.0
        %2692 = vmatpush1.msra.mxu0 0.0
        %2693 = vmatprep.subr.mxu0 0.0
        %2694 = vmatpush1.msra.mxu0 0.0
        %2695 = vmatprep.subr.mxu0 0.0
        %2696 = vmatpush1.msra.mxu0 0.0
        %2697 = vmatprep.subr.mxu0 0.0
        %2698 = vmatpush1.msra.mxu0 0.0
        %2699 = vmatprep.subr.mxu0 0.0
        %2700 = vmatpush1.msra.mxu0 0.0
        %2701 = vmatprep.subr.mxu0 0.0
        %2702 = vmatpush1.msra.mxu0 0.0
        %2703 = vmatprep.subr.mxu0 0.0
        %2704 = vmatpush1.msra.mxu0 0.0
        %2705 = vmatprep.subr.mxu0 0.0
        %2706 = vmatpush1.msra.mxu0 0.0
        %2707 = vmatprep.subr.mxu0 0.0
        %2708 = vmatpush1.msra.mxu0 0.0
        %2709 = vmatprep.subr.mxu0 0.0
        %2710 = vmatpush1.msra.mxu0 0.0
        %2711 = vmatprep.mubr.f32.mxu0 0.0
        %2712 = vmatmul.mubr.f32.gmra.mrb[0].mxu0 %v2642
        %v2713 = vpop.f32.mrb[0].mxu0
        %v2714 = vadd.f32 0.0, %v2713
        %v2715 = vpop.f32.mrb[0].mxu0
        %2716 = vmatprep.mubr.f32.mxu0 0.0
        %2717 = vmatmul.mubr.f32.gmra.mrb[0].mxu0 %v2645
        %v2718 = vpop.f32.mrb[0].mxu0
        %v2719 = vadd.f32 0.0, %v2718
        %v2720 = vpop.f32.mrb[0].mxu0
        %2721 = vdwg.mxu0
        %v2723 = vsel %vm2043, %v2232, 0
        %v2726 = vsel %vm2043, %v2233, 0
        %2728 = vmatprep.subr.mxu0 0.0
        %2729 = vmatpush1.msra.mxu0 %v388
        %2730 = vmatprep.subr.mxu0 0.0
        %2731 = vmatpush1.msra.mxu0 %v389
        %2732 = vmatprep.subr.mxu0 0.0
        %2733 = vmatpush1.msra.mxu0 0.0
        %2734 = vmatprep.subr.mxu0 0.0
        %2735 = vmatpush1.msra.mxu0 0.0
        %2736 = vmatprep.subr.mxu0 0.0
        %2737 = vmatpush1.msra.mxu0 0.0
        %2738 = vmatprep.subr.mxu0 0.0
        %2739 = vmatpush1.msra.mxu0 0.0
        %2740 = vmatprep.subr.mxu0 0.0
        %2741 = vmatpush1.msra.mxu0 0.0
        %2742 = vmatprep.subr.mxu0 0.0
        %2743 = vmatpush1.msra.mxu0 0.0
        %2744 = vmatprep.subr.mxu0 0.0
        %2745 = vmatpush1.msra.mxu0 0.0
        %2746 = vmatprep.subr.mxu0 0.0
        %2747 = vmatpush1.msra.mxu0 0.0
        %2748 = vmatprep.subr.mxu0 0.0
        %2749 = vmatpush1.msra.mxu0 0.0
        %2750 = vmatprep.subr.mxu0 0.0
        %2751 = vmatpush1.msra.mxu0 0.0
        %2752 = vmatprep.subr.mxu0 0.0
        %2753 = vmatpush1.msra.mxu0 0.0
        %2754 = vmatprep.subr.mxu0 0.0
        %2755 = vmatpush1.msra.mxu0 0.0
        %2756 = vmatprep.subr.mxu0 0.0
        %2757 = vmatpush1.msra.mxu0 0.0
        %2758 = vmatprep.subr.mxu0 0.0
        %2759 = vmatpush1.msra.mxu0 0.0
        %2760 = vmatprep.subr.mxu0 0.0
        %2761 = vmatpush1.msra.mxu0 0.0
        %2762 = vmatprep.subr.mxu0 0.0
        %2763 = vmatpush1.msra.mxu0 0.0
        %2764 = vmatprep.subr.mxu0 0.0
        %2765 = vmatpush1.msra.mxu0 0.0
        %2766 = vmatprep.subr.mxu0 0.0
        %2767 = vmatpush1.msra.mxu0 0.0
        %2768 = vmatprep.subr.mxu0 0.0
        %2769 = vmatpush1.msra.mxu0 0.0
        %2770 = vmatprep.subr.mxu0 0.0
        %2771 = vmatpush1.msra.mxu0 0.0
        %2772 = vmatprep.subr.mxu0 0.0
        %2773 = vmatpush1.msra.mxu0 0.0
        %2774 = vmatprep.subr.mxu0 0.0
        %2775 = vmatpush1.msra.mxu0 0.0
        %2776 = vmatprep.subr.mxu0 0.0
        %2777 = vmatpush1.msra.mxu0 0.0
        %2778 = vmatprep.subr.mxu0 0.0
        %2779 = vmatpush1.msra.mxu0 0.0
        %2780 = vmatprep.subr.mxu0 0.0
        %2781 = vmatpush1.msra.mxu0 0.0
        %2782 = vmatprep.subr.mxu0 0.0
        %2783 = vmatpush1.msra.mxu0 0.0
        %2784 = vmatprep.subr.mxu0 0.0
        %2785 = vmatpush1.msra.mxu0 0.0
        %2786 = vmatprep.subr.mxu0 0.0
        %2787 = vmatpush1.msra.mxu0 0.0
        %2788 = vmatprep.subr.mxu0 0.0
        %2789 = vmatpush1.msra.mxu0 0.0
        %2790 = vmatprep.subr.mxu0 0.0
        %2791 = vmatpush1.msra.mxu0 0.0
        %2792 = vmatprep.mubr.f32.mxu0 0.0
        %2793 = vmatmul.mubr.f32.gmra.mrb[0].mxu0 %v2723
        %v2794 = vpop.f32.mrb[0].mxu0
        %v2795 = vadd.f32 0.0, %v2794
        %v2796 = vpop.f32.mrb[0].mxu0
        %2797 = vmatprep.mubr.f32.mxu0 0.0
        %2798 = vmatmul.mubr.f32.gmra.mrb[0].mxu0 %v2726
        %v2799 = vpop.f32.mrb[0].mxu0
        %v2800 = vadd.f32 0.0, %v2799
        %v2801 = vpop.f32.mrb[0].mxu0
        %2802 = vdwg.mxu0
        %v2804 = vsel %vm2043, %v2234, 0
        %v2807 = vsel %vm2043, %v2235, 0
        %2809 = vmatprep.subr.mxu0 0.0
        %2810 = vmatpush1.msra.mxu0 %v390
        %2811 = vmatprep.subr.mxu0 0.0
        %2812 = vmatpush1.msra.mxu0 %v391
        %2813 = vmatprep.subr.mxu0 0.0
        %2814 = vmatpush1.msra.mxu0 0.0
        %2815 = vmatprep.subr.mxu0 0.0
        %2816 = vmatpush1.msra.mxu0 0.0
        %2817 = vmatprep.subr.mxu0 0.0
        %2818 = vmatpush1.msra.mxu0 0.0
        %2819 = vmatprep.subr.mxu0 0.0
        %2820 = vmatpush1.msra.mxu0 0.0
        %2821 = vmatprep.subr.mxu0 0.0
        %2822 = vmatpush1.msra.mxu0 0.0
        %2823 = vmatprep.subr.mxu0 0.0
        %2824 = vmatpush1.msra.mxu0 0.0
        %2825 = vmatprep.subr.mxu0 0.0
        %2826 = vmatpush1.msra.mxu0 0.0
        %2827 = vmatprep.subr.mxu0 0.0
        %2828 = vmatpush1.msra.mxu0 0.0
        %2829 = vmatprep.subr.mxu0 0.0
        %2830 = vmatpush1.msra.mxu0 0.0
        %2831 = vmatprep.subr.mxu0 0.0
        %2832 = vmatpush1.msra.mxu0 0.0
        %2833 = vmatprep.subr.mxu0 0.0
        %2834 = vmatpush1.msra.mxu0 0.0
        %2835 = vmatprep.subr.mxu0 0.0
        %2836 = vmatpush1.msra.mxu0 0.0
        %2837 = vmatprep.subr.mxu0 0.0
        %2838 = vmatpush1.msra.mxu0 0.0
        %2839 = vmatprep.subr.mxu0 0.0
        %2840 = vmatpush1.msra.mxu0 0.0
        %2841 = vmatprep.subr.mxu0 0.0
        %2842 = vmatpush1.msra.mxu0 0.0
        %2843 = vmatprep.subr.mxu0 0.0
        %2844 = vmatpush1.msra.mxu0 0.0
        %2845 = vmatprep.subr.mxu0 0.0
        %2846 = vmatpush1.msra.mxu0 0.0
        %2847 = vmatprep.subr.mxu0 0.0
        %2848 = vmatpush1.msra.mxu0 0.0
        %2849 = vmatprep.subr.mxu0 0.0
        %2850 = vmatpush1.msra.mxu0 0.0
        %2851 = vmatprep.subr.mxu0 0.0
        %2852 = vmatpush1.msra.mxu0 0.0
        %2853 = vmatprep.subr.mxu0 0.0
        %2854 = vmatpush1.msra.mxu0 0.0
        %2855 = vmatprep.subr.mxu0 0.0
        %2856 = vmatpush1.msra.mxu0 0.0
        %2857 = vmatprep.subr.mxu0 0.0
        %2858 = vmatpush1.msra.mxu0 0.0
        %2859 = vmatprep.subr.mxu0 0.0
        %2860 = vmatpush1.msra.mxu0 0.0
        %2861 = vmatprep.subr.mxu0 0.0
        %2862 = vmatpush1.msra.mxu0 0.0
        %2863 = vmatprep.subr.mxu0 0.0
        %2864 = vmatpush1.msra.mxu0 0.0
        %2865 = vmatprep.subr.mxu0 0.0
        %2866 = vmatpush1.msra.mxu0 0.0
        %2867 = vmatprep.subr.mxu0 0.0
        %2868 = vmatpush1.msra.mxu0 0.0
        %2869 = vmatprep.subr.mxu0 0.0
        %2870 = vmatpush1.msra.mxu0 0.0
        %2871 = vmatprep.subr.mxu0 0.0
        %2872 = vmatpush1.msra.mxu0 0.0
        %2873 = vmatprep.mubr.f32.mxu0 0.0
        %2874 = vmatmul.mubr.f32.gmra.mrb[0].mxu0 %v2804
        %v2875 = vpop.f32.mrb[0].mxu0
        %v2876 = vadd.f32 0.0, %v2875
        %v2877 = vpop.f32.mrb[0].mxu0
        %2878 = vmatprep.mubr.f32.mxu0 0.0
        %2879 = vmatmul.mubr.f32.gmra.mrb[0].mxu0 %v2807
        %v2880 = vpop.f32.mrb[0].mxu0
        %v2881 = vadd.f32 0.0, %v2880
        %v2882 = vpop.f32.mrb[0].mxu0
        %2883 = vdwg.mxu0
        %2884 = vst [vmem:[%s372] sm:$0xff] %v2309
        %2885 = vst [vmem:[%s372 + $0x8] sm:$0xff] %v2314
        %2886 = vst [vmem:[%s372 + $0x10] sm:$0xff] %v2390
        %2887 = vst [vmem:[%s372 + $0x18] sm:$0xff] %v2395
        %2888 = vst [vmem:[%s372 + $0x20] sm:$0xff] %v2471
        %2889 = vst [vmem:[%s372 + $0x28] sm:$0xff] %v2476
        %2890 = vst [vmem:[%s372 + $0x30] sm:$0xff] %v2552
        %2891 = vst [vmem:[%s372 + $0x38] sm:$0xff] %v2557
        %2892 = vst [vmem:[%s372 + $0x40] sm:$0xff] %v2633
        %2893 = vst [vmem:[%s372 + $0x48] sm:$0xff] %v2638
        %2894 = vst [vmem:[%s372 + $0x50] sm:$0xff] %v2714
        %2895 = vst [vmem:[%s372 + $0x58] sm:$0xff] %v2719
        %2896 = vst [vmem:[%s372 + $0x60] sm:$0xff] %v2795
        %2897 = vst [vmem:[%s372 + $0x68] sm:$0xff] %v2800
        %2898 = vst [vmem:[%s372 + $0x70] sm:$0xff] %v2876
        %2899 = vst [vmem:[%s372 + $0x78] sm:$0xff] %v2881
        %s2900 = sand.u32 %s197, 1
        %s2901 = scalar_lea.sflag [#allocation4], %s2900
        %s2902 = sand.u32 %s197, 1
        %s2903 = smul.addr %s2902, 128
        %s2904 = scalar_lea.vmem [#allocation8], %s2903
        // Predicated region
        $region61: #{tpu_custom_call.1} parent=47 // pred_check
          %p2905 = pneg %p207
        $region62: #{tpu_custom_call.1} parent=47 // pred_check_branch
          %2907 = sbr.rel (%p2905) target = $region64
        $region63: #{tpu_custom_call.1} parent=47 // pred_region
          %s2908 = smul.u32 8, %s27
          %s2910 = ssub.s32 2048, 2048
          %2911 = vsyncadd %s2901, %s2910
          %s2912 = smul.addr %s2908, 2
          %s2913 = smul.addr %s2912, 128
          %s2914 = scalar_lea.hbm %s7, %s2913
          %s2915 = sshll.u32 %s2904, 4
          %s2916 = int_to_ptr.vmem [resolvable:$true] %s2915
          %2921 = dma.vmem_to_hbm [thread:$0]  %s2916, 2048, %s2914, %s2901, 128, 128, 8
        $region64: #{tpu_custom_call.1} parent=47 // pred_fallthru
          _
      $region48: #{tpu_custom_call.1} parent=5 // pred_fallthru
        _
      %p2922 = scmp.le.s32.totalorder 2, %s22
      // Predicated region
      $region65: #{tpu_custom_call.1} parent=5 // pred_check
        %p2923 = pneg %p2922
      $region66: #{tpu_custom_call.1} parent=5 // pred_check_branch
        %2925 = sbr.rel (%p2923) target = $region68
      $region67: #{tpu_custom_call.1} parent=5 // pred_region
        %s2926 = ssub.s32 %s22, 2
        // Predicated region
        $region69: #{tpu_custom_call.1} parent=67 // pred_check
          %p2927 = pneg %p213
        $region70: #{tpu_custom_call.1} parent=67 // pred_check_branch
          %2929 = sbr.rel (%p2927) target = $region72
        $region71: #{tpu_custom_call.1} parent=67 // pred_region
          %s2930 = sand.u32 %s198, 1
          %s2931 = scalar_lea.sflag [#allocation4], %s2930
          %s2932 = sand.u32 %s198, 1
          %s2933 = smul.addr %s2932, 128
          %s2934 = scalar_lea.vmem [#allocation8], %s2933
          %2935 = dma.done %s2931, 2048
        $region72: #{tpu_custom_call.1} parent=67 // pred_fallthru
          _
      $region68: #{tpu_custom_call.1} parent=5 // pred_fallthru
        _
    $region6: #{tpu_custom_call.1} parent=1 // loop_footer
      %s26 = sadd.s32 1, %s22
    $region7: #{tpu_custom_call.1} parent=1 // loop_footer_branch
      %21 = sbr.rel target = $region3
    $region8: #{tpu_custom_call.1} parent=1 // loop_exit
      _
    %2936 = vsyncpa [#allocation3], 1
    %s2937 = scalar_lea.sflag [#allocation3], 1
    %2938 = vsyncpa %s2937, 1
    %2939 = vsyncpa [#allocation6], 1
    %s2940 = scalar_lea.sflag [#allocation6], 1
    %2941 = vsyncpa %s2940, 1
    %2942 = vsyncpa [#allocation4], 1
    %s2943 = scalar_lea.sflag [#allocation4], 1
    %2944 = vsyncpa %s2943, 1

</llo_original>
